<compile_context>
chip_gen: v7x
topology: tpu7x:2x2x1
jax: 0.10.0
libtpu: 0.0.40
codegen_flags: <defaults>
</compile_context>

<pallas_src>
import functools

import jax
import jax.numpy as jnp
from jax.experimental import pallas as pl
from jax.experimental.pallas import tpu as pltpu

D = 512            # self.in_features = 512 (hardcoded in the module)
NUM_CLASSES = 16
HEAD_PAD = 128     # lane-dense padded width of the classifier head
BN_EPS = 1e-5


def _round_up(x, m):
    return (x + m - 1) // m * m


def _cdiv(a, b):
    return -(-a // b)


def clip_classifier_kernel(
    vimg_ref,   # [bt, D]        bf16  img_model.encode(images)
    vtag_ref,   # [bt, D]        bf16  clip_model.get_text_features(**inputs)
    vtxt_ref,   # [bt, D]        bf16  text_model.encode(texts)
    aw_ref,     # [1, D]         f32   AttentionFusion3d weight row
    w1_ref,     # [D, D]         bf16  (BN1 folded in), stored [in, out]
    b1_ref,     # [1, D]         f32   (BN1 folded in)
    w2_ref,     # [D, D]         bf16  (BN2 folded in)
    b2_ref,     # [1, D]         f32
    w3_ref,     # [D, HEAD_PAD]  bf16  (zero-padded head)
    b3_ref,     # [1, HEAD_PAD]  f32
    out_ref,    # [bt, HEAD_PAD] bf16
):
    aw = aw_ref[...]
    v1 = vimg_ref[...].astype(jnp.float32)
    v2 = vtag_ref[...].astype(jnp.float32)
    v3 = vtxt_ref[...].astype(jnp.float32)

    # --- AttentionFusion3d ---
    # attention_layer(stack([v1,v2,v3],1)).squeeze(-1) == per-branch dot product;
    # softmax over the 3 branches, then convex combination.  The [bt,1] score
    # ops are a handful of VPU/EUP instructions -- pure filler under the MXU.
    s1 = jnp.sum(v1 * aw, axis=-1, keepdims=True)                  # [bt, 1]
    s2 = jnp.sum(v2 * aw, axis=-1, keepdims=True)
    s3 = jnp.sum(v3 * aw, axis=-1, keepdims=True)
    m = jnp.maximum(jnp.maximum(s1, s2), s3)
    e1 = jnp.exp(s1 - m)
    e2 = jnp.exp(s2 - m)
    e3 = jnp.exp(s3 - m)
    inv_den = pl.reciprocal(e1 + e2 + e3, approx=True)             # EUP slot
    fused = (e1 * inv_den) * v1 + (e2 * inv_den) * v2 + (e3 * inv_den) * v3

    # --- classifier MLP (BN folded into W/b; Dropout is identity in eval) ---
    h = jnp.dot(fused.astype(jnp.bfloat16), w1_ref[...],
                preferred_element_type=jnp.float32) + b1_ref[...]
    h = jnp.maximum(h, 0.0)

    h = jnp.dot(h.astype(jnp.bfloat16), w2_ref[...],
                preferred_element_type=jnp.float32) + b2_ref[...]
    h = jnp.maximum(h, 0.0)

    out = jnp.dot(h.astype(jnp.bfloat16), w3_ref[...],
                  preferred_element_type=jnp.float32) + b3_ref[...]
    out_ref[...] = out.astype(out_ref.dtype)


def fold_params(params):
    """Host-side prep: fold BN running stats into the Linear layers, pad the
    classifier head to 128 lanes, cast matmul weights to bf16."""
    s1 = params["g1"] * jax.lax.rsqrt(params["var1"] + BN_EPS)          # [1, D]
    w1 = (params["w1"] * s1).astype(jnp.bfloat16)                       # column scale
    b1 = ((params["b1"] - params["m1"]) * s1 + params["be1"]).astype(jnp.float32)

    s2 = params["g2"] * jax.lax.rsqrt(params["var2"] + BN_EPS)
    w2 = (params["w2"] * s2).astype(jnp.bfloat16)
    b2 = ((params["b2"] - params["m2"]) * s2 + params["be2"]).astype(jnp.float32)

    w3 = jnp.zeros((D, HEAD_PAD), jnp.float32).at[:, :NUM_CLASSES].set(params["w3"])
    b3 = jnp.zeros((1, HEAD_PAD), jnp.float32).at[:, :NUM_CLASSES].set(params["b3"])

    return {
        "attn_w": params["attn_w"].astype(jnp.float32),
        "w1": w1, "b1": b1,
        "w2": w2, "b2": b2,
        "w3": w3.astype(jnp.bfloat16), "b3": b3,
    }


def _replicated_spec(shape):
    nd = len(shape)
    return pl.BlockSpec(shape, lambda i, _nd=nd: (0,) * _nd)


def _choose_bt(B, batch_tile):
    """Balanced batch tile: multiple of 8, <= batch_tile, minimal padding
    waste, and >=2 grid steps for B>=16 so v7x can use both TensorCores."""
    n_tiles = max(1, _cdiv(B, batch_tile))
    if B >= 16:
        n_tiles = max(n_tiles, 2)
    return _round_up(_cdiv(B, n_tiles), 8)


@functools.partial(jax.jit, static_argnames=("batch_tile",))
def clip_classifier_forward(v_img, v_tag, v_txt, folded, *, batch_tile=512):
    B = v_img.shape[0]
    bt = _choose_bt(B, batch_tile)
    Bp = _round_up(B, bt)

    def prep(x):
        # bf16 embedding DMA (ideally the encoders already emit bf16).
        x = x.astype(jnp.bfloat16)
        if Bp != B:
            x = jnp.pad(x, ((0, Bp - B), (0, 0)))
        return x

    v_img = prep(v_img)
    v_tag = prep(v_tag)
    v_txt = prep(v_txt)

    grid = (Bp // bt,)
    emb_spec = pl.BlockSpec((bt, D), lambda i: (i, 0))
    in_specs = [
        emb_spec, emb_spec, emb_spec,                    # embeddings: batch-tiled
        _replicated_spec((1, D)),                        # attn weight
        _replicated_spec((D, D)),                        # w1 (bf16)
        _replicated_spec((1, D)),                        # b1
        _replicated_spec((D, D)),                        # w2 (bf16)
        _replicated_spec((1, D)),                        # b2
        _replicated_spec((D, HEAD_PAD)),                 # w3 (bf16, padded)
        _replicated_spec((1, HEAD_PAD)),                 # b3 (padded)
    ]
    out_spec = pl.BlockSpec((bt, HEAD_PAD), lambda i: (i, 0))

    # Double-buffered per-step VMEM estimate; raise the scoped limit only if a
    # user-supplied batch_tile would blow past v5e's 16 MiB default.
    vmem_est = (2 * 3 * bt * D * 2                       # bf16 embedding tiles
                + 2 * (2 * D * D + D * HEAD_PAD) * 2     # bf16 weights
                + 2 * (2 * D + D + HEAD_PAD) * 4         # f32 biases + attn_w
                + 2 * bt * HEAD_PAD * 2)                 # bf16 output tile
    vmem_limit = min(2 * vmem_est, 100 << 20) if vmem_est > (12 << 20) else None

    out_padded = pl.pallas_call(
        clip_classifier_kernel,
        out_shape=jax.ShapeDtypeStruct((Bp, HEAD_PAD), jnp.bfloat16),
        grid=grid,
        in_specs=in_specs,
        out_specs=out_spec,
        compiler_params=pltpu.CompilerParams(
            dimension_semantics=("parallel",),
            vmem_limit_bytes=vmem_limit,
        ),
    )(
        v_img, v_tag, v_txt,
        folded["attn_w"],
        folded["w1"], folded["b1"],
        folded["w2"], folded["b2"],
        folded["w3"], folded["b3"],
    )
    return out_padded[:B, :NUM_CLASSES].astype(jnp.float32)


def reference_forward(v_img, v_tag, v_txt, p):
    # Pure-JAX f32 reference mirroring the PyTorch module (eval mode).
    s = jnp.stack([
        jnp.sum(v_img * p["attn_w"], -1),
        jnp.sum(v_tag * p["attn_w"], -1),
        jnp.sum(v_txt * p["attn_w"], -1),
    ], axis=1)
    w = jax.nn.softmax(s, axis=1)
    fused = w[:, 0:1] * v_img + w[:, 1:2] * v_tag + w[:, 2:3] * v_txt

    def bn(x, g, b, m, v):
        return (x - m) * g / jnp.sqrt(v + BN_EPS) + b

    h = fused @ p["w1"] + p["b1"]
    h = jnp.maximum(bn(h, p["g1"], p["be1"], p["m1"], p["var1"]), 0.0)
    h = h @ p["w2"] + p["b2"]
    h = jnp.maximum(bn(h, p["g2"], p["be2"], p["m2"], p["var2"]), 0.0)
    return h @ p["w3"] + p["b3"]


def init_params(key):
    ks = jax.random.split(key, 16)
    scale = 0.02
    return {
        # AttentionFusion3d.attention_layer: Linear(512, 1, bias=False)
        "attn_w": scale * jax.random.normal(ks[0], (1, D), jnp.float32),
        # Linear(512, 512) stored transposed [in, out]
        "w1": scale * jax.random.normal(ks[1], (D, D), jnp.float32),
        "b1": scale * jax.random.normal(ks[2], (1, D), jnp.float32),
        # BatchNorm1d(512): non-trivial running stats to exercise the folding
        "g1": 1.0 + 0.1 * jax.random.normal(ks[3], (1, D), jnp.float32),
        "be1": 0.1 * jax.random.normal(ks[4], (1, D), jnp.float32),
        "m1": 0.1 * jax.random.normal(ks[5], (1, D), jnp.float32),
        "var1": jax.random.uniform(ks[6], (1, D), jnp.float32, 0.5, 1.5),
        "w2": scale * jax.random.normal(ks[7], (D, D), jnp.float32),
        "b2": scale * jax.random.normal(ks[8], (1, D), jnp.float32),
        "g2": 1.0 + 0.1 * jax.random.normal(ks[9], (1, D), jnp.float32),
        "be2": 0.1 * jax.random.normal(ks[10], (1, D), jnp.float32),
        "m2": 0.1 * jax.random.normal(ks[11], (1, D), jnp.float32),
        "var2": jax.random.uniform(ks[12], (1, D), jnp.float32, 0.5, 1.5),
        # Linear(512, num_classes)
        "w3": scale * jax.random.normal(ks[13], (D, NUM_CLASSES), jnp.float32),
        "b3": scale * jax.random.normal(ks[14], (1, NUM_CLASSES), jnp.float32),
    }


if __name__ == "__main__":
    key = jax.random.PRNGKey(0)
    k_img, k_tag, k_txt, k_par = jax.random.split(key, 4)

    B = 8
    # TODO(synk): the frozen CLIP / text / image encoders are external models;
    # their 512-d output embeddings are synthesized here as kernel inputs.
    v_img = jax.random.normal(k_img, (B, D), jnp.float32)  # img_model.encode(images)
    v_tag = jax.random.normal(k_tag, (B, D), jnp.float32)  # clip_model.get_text_features(**inputs)
    v_txt = jax.random.normal(k_txt, (B, D), jnp.float32)  # text_model.encode(texts)

    params = init_params(k_par)
    folded = fold_params(params)

    logits = clip_classifier_forward(v_img, v_tag, v_txt, folded)
    jax.block_until_ready(logits)

    ref = reference_forward(v_img, v_tag, v_txt, params)
    assert logits.shape == (B, NUM_CLASSES)
    max_err = float(jnp.max(jnp.abs(logits - ref)))
    # bf16 embeddings / weights / output store -> relaxed tolerance vs f32 ref
    assert jnp.allclose(logits, ref, rtol=5e-2, atol=2e-2), f"max abs err {max_err}"

    print("KERNEL_OK")
</pallas_src>

<mosaic_0001>
module attributes {stable_mosaic.version = 11 : i64} {
  func.func @clip_classifier_kernel(%arg0: i32, %arg1: memref<8x512xbf16, #tpu.memory_space<vmem>>, %arg2: memref<8x512xbf16, #tpu.memory_space<vmem>>, %arg3: memref<8x512xbf16, #tpu.memory_space<vmem>>, %arg4: memref<1x512xf32, #tpu.memory_space<vmem>>, %arg5: memref<512x512xbf16, #tpu.memory_space<vmem>>, %arg6: memref<1x512xf32, #tpu.memory_space<vmem>>, %arg7: memref<512x512xbf16, #tpu.memory_space<vmem>>, %arg8: memref<1x512xf32, #tpu.memory_space<vmem>>, %arg9: memref<512x128xbf16, #tpu.memory_space<vmem>>, %arg10: memref<1x128xf32, #tpu.memory_space<vmem>>, %arg11: memref<8x128xbf16, #tpu.memory_space<vmem>>) attributes {dimension_semantics = [#tpu.dimension_semantics<parallel>], iteration_bounds = array<i64: 1>, scalar_prefetch = 0 : i64, scratch_operands = 0 : i64, tpu.core_type = #tpu.core_type<tc>, window_params = [{transform_indices = @transform_0, window_bounds = array<i64: 8, 512>}, {transform_indices = @transform_1, window_bounds = array<i64: 8, 512>}, {transform_indices = @transform_2, window_bounds = array<i64: 8, 512>}, {pipeline_mode = #tpu.pipeline_mode<synchronous>, transform_indices = @transform_3, window_bounds = array<i64: 1, 512>}, {pipeline_mode = #tpu.pipeline_mode<synchronous>, transform_indices = @transform_4, window_bounds = array<i64: 512, 512>}, {pipeline_mode = #tpu.pipeline_mode<synchronous>, transform_indices = @transform_5, window_bounds = array<i64: 1, 512>}, {pipeline_mode = #tpu.pipeline_mode<synchronous>, transform_indices = @transform_6, window_bounds = array<i64: 512, 512>}, {pipeline_mode = #tpu.pipeline_mode<synchronous>, transform_indices = @transform_7, window_bounds = array<i64: 1, 512>}, {pipeline_mode = #tpu.pipeline_mode<synchronous>, transform_indices = @transform_8, window_bounds = array<i64: 512, 128>}, {pipeline_mode = #tpu.pipeline_mode<synchronous>, transform_indices = @transform_9, window_bounds = array<i64: 1, 128>}, {transform_indices = @transform_10, window_bounds = array<i64: 8, 128>}]} {
    %c0 = arith.constant 0 : index
    %c0_0 = arith.constant 0 : index
    %0 = vector.load %arg4[%c0, %c0_0] : memref<1x512xf32, #tpu.memory_space<vmem>>, vector<1x512xf32>
    %c0_1 = arith.constant 0 : index
    %c0_2 = arith.constant 0 : index
    %1 = vector.load %arg1[%c0_1, %c0_2] : memref<8x512xbf16, #tpu.memory_space<vmem>>, vector<8x512xbf16>
    %2 = arith.extf %1 : vector<8x512xbf16> to vector<8x512xf32>
    %c0_3 = arith.constant 0 : index
    %c0_4 = arith.constant 0 : index
    %3 = vector.load %arg2[%c0_3, %c0_4] : memref<8x512xbf16, #tpu.memory_space<vmem>>, vector<8x512xbf16>
    %4 = arith.extf %3 : vector<8x512xbf16> to vector<8x512xf32>
    %c0_5 = arith.constant 0 : index
    %c0_6 = arith.constant 0 : index
    %5 = vector.load %arg3[%c0_5, %c0_6] : memref<8x512xbf16, #tpu.memory_space<vmem>>, vector<8x512xbf16>
    %6 = arith.extf %5 : vector<8x512xbf16> to vector<8x512xf32>
    %7 = vector.broadcast %0 : vector<1x512xf32> to vector<8x512xf32>
    %8 = arith.mulf %2, %7 : vector<8x512xf32>
    %cst = arith.constant dense<0.000000e+00> : vector<8xf32>
    %9 = vector.multi_reduction <add>, %8, %cst [1] : vector<8x512xf32> to vector<8xf32>
    %10 = vector.shape_cast %9 : vector<8xf32> to vector<8x1xf32>
    %11 = vector.broadcast %0 : vector<1x512xf32> to vector<8x512xf32>
    %12 = arith.mulf %4, %11 : vector<8x512xf32>
    %cst_7 = arith.constant dense<0.000000e+00> : vector<8xf32>
    %13 = vector.multi_reduction <add>, %12, %cst_7 [1] : vector<8x512xf32> to vector<8xf32>
    %14 = vector.shape_cast %13 : vector<8xf32> to vector<8x1xf32>
    %15 = vector.broadcast %0 : vector<1x512xf32> to vector<8x512xf32>
    %16 = arith.mulf %6, %15 : vector<8x512xf32>
    %cst_8 = arith.constant dense<0.000000e+00> : vector<8xf32>
    %17 = vector.multi_reduction <add>, %16, %cst_8 [1] : vector<8x512xf32> to vector<8xf32>
    %18 = vector.shape_cast %17 : vector<8xf32> to vector<8x1xf32>
    %19 = arith.maximumf %10, %14 : vector<8x1xf32>
    %20 = arith.maximumf %19, %18 : vector<8x1xf32>
    %21 = arith.subf %10, %20 : vector<8x1xf32>
    %22 = math.exp %21 : vector<8x1xf32>
    %23 = arith.subf %14, %20 : vector<8x1xf32>
    %24 = math.exp %23 : vector<8x1xf32>
    %25 = arith.subf %18, %20 : vector<8x1xf32>
    %26 = math.exp %25 : vector<8x1xf32>
    %27 = arith.addf %22, %24 : vector<8x1xf32>
    %28 = arith.addf %27, %26 : vector<8x1xf32>
    %29 = tpu.reciprocal %28 {approx = true} : vector<8x1xf32> -> vector<8x1xf32>
    %30 = arith.mulf %22, %29 : vector<8x1xf32>
    %31 = vector.broadcast %30 : vector<8x1xf32> to vector<8x512xf32>
    %32 = arith.mulf %31, %2 : vector<8x512xf32>
    %33 = arith.mulf %24, %29 : vector<8x1xf32>
    %34 = vector.broadcast %33 : vector<8x1xf32> to vector<8x512xf32>
    %35 = arith.mulf %34, %4 : vector<8x512xf32>
    %36 = arith.addf %32, %35 : vector<8x512xf32>
    %37 = arith.mulf %26, %29 : vector<8x1xf32>
    %38 = vector.broadcast %37 : vector<8x1xf32> to vector<8x512xf32>
    %39 = arith.mulf %38, %6 : vector<8x512xf32>
    %40 = arith.addf %36, %39 : vector<8x512xf32>
    %41 = arith.truncf %40 : vector<8x512xf32> to vector<8x512xbf16>
    %c0_9 = arith.constant 0 : index
    %c0_10 = arith.constant 0 : index
    %42 = vector.load %arg5[%c0_9, %c0_10] : memref<512x512xbf16, #tpu.memory_space<vmem>>, vector<512x512xbf16>
    %cst_11 = arith.constant dense<0.000000e+00> : vector<8x512xf32>
    %43 = tpu.matmul %41, %42, %cst_11 {dimension_numbers = #tpu.dot_dimension_numbers<[1], [0], [0], [1], [0, 0, 1, 1], [], []>} : vector<8x512xbf16>, vector<512x512xbf16>, vector<8x512xf32> -> vector<8x512xf32>
    %c0_12 = arith.constant 0 : index
    %c0_13 = arith.constant 0 : index
    %44 = vector.load %arg6[%c0_12, %c0_13] : memref<1x512xf32, #tpu.memory_space<vmem>>, vector<1x512xf32>
    %45 = vector.broadcast %44 : vector<1x512xf32> to vector<8x512xf32>
    %46 = arith.addf %43, %45 : vector<8x512xf32>
    %cst_14 = arith.constant 0.000000e+00 : f32
    %47 = vector.broadcast %cst_14 : f32 to vector<8x512xf32>
    %48 = arith.maximumf %46, %47 : vector<8x512xf32>
    %49 = arith.truncf %48 : vector<8x512xf32> to vector<8x512xbf16>
    %c0_15 = arith.constant 0 : index
    %c0_16 = arith.constant 0 : index
    %50 = vector.load %arg7[%c0_15, %c0_16] : memref<512x512xbf16, #tpu.memory_space<vmem>>, vector<512x512xbf16>
    %cst_17 = arith.constant dense<0.000000e+00> : vector<8x512xf32>
    %51 = tpu.matmul %49, %50, %cst_17 {dimension_numbers = #tpu.dot_dimension_numbers<[1], [0], [0], [1], [0, 0, 1, 1], [], []>} : vector<8x512xbf16>, vector<512x512xbf16>, vector<8x512xf32> -> vector<8x512xf32>
    %c0_18 = arith.constant 0 : index
    %c0_19 = arith.constant 0 : index
    %52 = vector.load %arg8[%c0_18, %c0_19] : memref<1x512xf32, #tpu.memory_space<vmem>>, vector<1x512xf32>
    %53 = vector.broadcast %52 : vector<1x512xf32> to vector<8x512xf32>
    %54 = arith.addf %51, %53 : vector<8x512xf32>
    %cst_20 = arith.constant 0.000000e+00 : f32
    %55 = vector.broadcast %cst_20 : f32 to vector<8x512xf32>
    %56 = arith.maximumf %54, %55 : vector<8x512xf32>
    %57 = arith.truncf %56 : vector<8x512xf32> to vector<8x512xbf16>
    %c0_21 = arith.constant 0 : index
    %c0_22 = arith.constant 0 : index
    %58 = vector.load %arg9[%c0_21, %c0_22] : memref<512x128xbf16, #tpu.memory_space<vmem>>, vector<512x128xbf16>
    %cst_23 = arith.constant dense<0.000000e+00> : vector<8x128xf32>
    %59 = tpu.matmul %57, %58, %cst_23 {dimension_numbers = #tpu.dot_dimension_numbers<[1], [0], [0], [1], [0, 0, 1, 1], [], []>} : vector<8x512xbf16>, vector<512x128xbf16>, vector<8x128xf32> -> vector<8x128xf32>
    %c0_24 = arith.constant 0 : index
    %c0_25 = arith.constant 0 : index
    %60 = vector.load %arg10[%c0_24, %c0_25] : memref<1x128xf32, #tpu.memory_space<vmem>>, vector<1x128xf32>
    %61 = vector.broadcast %60 : vector<1x128xf32> to vector<8x128xf32>
    %62 = arith.addf %59, %61 : vector<8x128xf32>
    %63 = arith.truncf %62 : vector<8x128xf32> to vector<8x128xbf16>
    %c0_26 = arith.constant 0 : index
    %c0_27 = arith.constant 0 : index
    %64 = vector.load %arg11[%c0_26, %c0_27] : memref<8x128xbf16, #tpu.memory_space<vmem>>, vector<8x128xbf16>
    tpu.vector_store %arg11[%c0_26, %c0_27], %63 {strides = array<i32>} : memref<8x128xbf16, #tpu.memory_space<vmem>>, vector<8x128xbf16>,
    return
  }
  func.func @transform_0(%arg0: i32) -> (i32, i32) {
    %c0_i32 = arith.constant 0 : i32
    %c0_i32_0 = arith.constant 0 : i32
    return %arg0, %c0_i32 : i32, i32
  }
  func.func @transform_1(%arg0: i32) -> (i32, i32) {
    %c0_i32 = arith.constant 0 : i32
    %c0_i32_0 = arith.constant 0 : i32
    return %arg0, %c0_i32 : i32, i32
  }
  func.func @transform_2(%arg0: i32) -> (i32, i32) {
    %c0_i32 = arith.constant 0 : i32
    %c0_i32_0 = arith.constant 0 : i32
    return %arg0, %c0_i32 : i32, i32
  }
  func.func @transform_3(%arg0: i32) -> (i32, i32) {
    %c0_i32 = arith.constant 0 : i32
    %c0_i32_0 = arith.constant 0 : i32
    %c0_i32_1 = arith.constant 0 : i32
    return %c0_i32, %c0_i32_0 : i32, i32
  }
  func.func @transform_4(%arg0: i32) -> (i32, i32) {
    %c0_i32 = arith.constant 0 : i32
    %c0_i32_0 = arith.constant 0 : i32
    %c0_i32_1 = arith.constant 0 : i32
    return %c0_i32, %c0_i32_0 : i32, i32
  }
  func.func @transform_5(%arg0: i32) -> (i32, i32) {
    %c0_i32 = arith.constant 0 : i32
    %c0_i32_0 = arith.constant 0 : i32
    %c0_i32_1 = arith.constant 0 : i32
    return %c0_i32, %c0_i32_0 : i32, i32
  }
  func.func @transform_6(%arg0: i32) -> (i32, i32) {
    %c0_i32 = arith.constant 0 : i32
    %c0_i32_0 = arith.constant 0 : i32
    %c0_i32_1 = arith.constant 0 : i32
    return %c0_i32, %c0_i32_0 : i32, i32
  }
  func.func @transform_7(%arg0: i32) -> (i32, i32) {
    %c0_i32 = arith.constant 0 : i32
    %c0_i32_0 = arith.constant 0 : i32
    %c0_i32_1 = arith.constant 0 : i32
    return %c0_i32, %c0_i32_0 : i32, i32
  }
  func.func @transform_8(%arg0: i32) -> (i32, i32) {
    %c0_i32 = arith.constant 0 : i32
    %c0_i32_0 = arith.constant 0 : i32
    %c0_i32_1 = arith.constant 0 : i32
    return %c0_i32, %c0_i32_0 : i32, i32
  }
  func.func @transform_9(%arg0: i32) -> (i32, i32) {
    %c0_i32 = arith.constant 0 : i32
    %c0_i32_0 = arith.constant 0 : i32
    %c0_i32_1 = arith.constant 0 : i32
    return %c0_i32, %c0_i32_0 : i32, i32
  }
  func.func @transform_10(%arg0: i32) -> (i32, i32) {
    %c0_i32 = arith.constant 0 : i32
    %c0_i32_0 = arith.constant 0 : i32
    return %arg0, %c0_i32 : i32, i32
  }
}

</mosaic_0001>

<llo_original>
// kernel: clip_classifier_forward.1
$region0: #{clip_classifier_forward.1}
  #allocation0 [shape = 'u32[]', space=smem, size = 0x4, offset = 0x4, fixed_abs, tag = 'smem constant byte address 0x4 - core index']
  #allocation1 [shape = 'u32[144,128]{1,0:T(1,128)}', space=vmem, size = 0x12000, scoped, tag = 'internal scratch']
  %s0 = inlined_call_operand.vmem [shape: bf16[8,512], index: 0, kind: input, shape index: {}]
  %s1 = inlined_call_operand.vmem [shape: bf16[8,512], index: 1, kind: input, shape index: {}]
  %s2 = inlined_call_operand.vmem [shape: bf16[8,512], index: 2, kind: input, shape index: {}]
  %s3 = inlined_call_operand.vmem [shape: f32[1,512], index: 3, kind: input, shape index: {}]
  %s4 = inlined_call_operand.hbm [shape: bf16[512,512], index: 4, kind: input, shape index: {}]
  %s5 = inlined_call_operand.vmem [shape: f32[1,512], index: 5, kind: input, shape index: {}]
  %s6 = inlined_call_operand.hbm [shape: bf16[512,512], index: 6, kind: input, shape index: {}]
  %s7 = inlined_call_operand.vmem [shape: f32[1,512], index: 7, kind: input, shape index: {}]
  %s8 = inlined_call_operand.hbm [shape: bf16[512,128], index: 8, kind: input, shape index: {}]
  %s9 = inlined_call_operand.vmem [shape: f32[1,128], index: 9, kind: input, shape index: {}]
  %s10 = inlined_call_operand.vmem [shape: bf16[8,128], index: 10, kind: output, shape index: {}]
  %s11 = sld [smem:[#allocation0]]
  $region62: #{clip_classifier_forward.1} parent=0
    _
  %s13 = ssub.s32 1, %s11
  %s14 = scalar_select 0, %s13, %s11
  $region1: #{clip_classifier_forward.1} parent=0
    #allocation2 [shape = 'u8[524288]{0}', space=vmem, size = 0x80000, scoped, tag = 'input window, operand 4, single buffered']
    #allocation3 [shape = 's32[1]{0}', space=sflag, size = 0x4, scoped, tag = 'scoped memory for clip_classifier_forward.1']
    #allocation4 [shape = 'u8[524288]{0}', space=vmem, size = 0x80000, scoped, tag = 'input window, operand 6, single buffered']
    #allocation5 [shape = 's32[1]{0}', space=sflag, size = 0x4, scoped, tag = 'scoped memory for clip_classifier_forward.1']
    #allocation6 [shape = 'u8[131072]{0}', space=vmem, size = 0x20000, scoped, tag = 'input window, operand 8, single buffered']
    %15 = vsyncpa [#allocation3], 0
    %16 = vsyncpa [#allocation5], 0
    // Predicated region
    $region2: #{clip_classifier_forward.1} parent=1 // pred_check
      _
    $region3: #{clip_classifier_forward.1} parent=1 // pred_check_branch
      %18 = sbr.rel (0) target = $region5
    $region4: #{clip_classifier_forward.1} parent=1 // pred_region
      _
    $region5: #{clip_classifier_forward.1} parent=1 // pred_fallthru
      _
    // Predicated region
    $region6: #{clip_classifier_forward.1} parent=1 // pred_check
      _
    $region7: #{clip_classifier_forward.1} parent=1 // pred_check_branch
      %20 = sbr.rel (0) target = $region9
    $region8: #{clip_classifier_forward.1} parent=1 // pred_region
      _
    $region9: #{clip_classifier_forward.1} parent=1 // pred_fallthru
      _
    // Predicated region
    $region10: #{clip_classifier_forward.1} parent=1 // pred_check
      _
    $region11: #{clip_classifier_forward.1} parent=1 // pred_check_branch
      %22 = sbr.rel (0) target = $region13
    $region12: #{clip_classifier_forward.1} parent=1 // pred_region
      _
    $region13: #{clip_classifier_forward.1} parent=1 // pred_fallthru
      _
    // Predicated region
    $region14: #{clip_classifier_forward.1} parent=1 // pred_check
      _
    $region15: #{clip_classifier_forward.1} parent=1 // pred_check_branch
      %24 = sbr.rel (0) target = $region17
    $region16: #{clip_classifier_forward.1} parent=1 // pred_region
      _
    $region17: #{clip_classifier_forward.1} parent=1 // pred_fallthru
      _
    // Predicated region
    $region18: #{clip_classifier_forward.1} parent=1 // pred_check
      _
    $region19: #{clip_classifier_forward.1} parent=1 // pred_check_branch
      %26 = sbr.rel (0) target = $region21
    $region20: #{clip_classifier_forward.1} parent=1 // pred_region
      %s28 = ssub.s32 16384, 16384
      %29 = vsyncadd [#allocation3], %s28
      %s30 = sshll.u32 [#allocation2], 4
      %s31 = int_to_ptr.vmem [resolvable:$true] %s30
      %36 = dma.hbm_to_vmem [thread:$0]  %s4, 16384, %s31, [#allocation3], 256, 256, 16
    $region21: #{clip_classifier_forward.1} parent=1 // pred_fallthru
      _
    // Predicated region
    $region22: #{clip_classifier_forward.1} parent=1 // pred_check
      _
    $region23: #{clip_classifier_forward.1} parent=1 // pred_check_branch
      %38 = sbr.rel (0) target = $region25
    $region24: #{clip_classifier_forward.1} parent=1 // pred_region
      _
    $region25: #{clip_classifier_forward.1} parent=1 // pred_fallthru
      _
    // Predicated region
    $region26: #{clip_classifier_forward.1} parent=1 // pred_check
      _
    $region27: #{clip_classifier_forward.1} parent=1 // pred_check_branch
      %40 = sbr.rel (0) target = $region29
    $region28: #{clip_classifier_forward.1} parent=1 // pred_region
      %s42 = ssub.s32 16384, 16384
      %43 = vsyncadd [#allocation5], %s42
      %s44 = sshll.u32 [#allocation4], 4
      %s45 = int_to_ptr.vmem [resolvable:$true] %s44
      %50 = dma.hbm_to_vmem [thread:$0]  %s6, 16384, %s45, [#allocation5], 256, 256, 16
    $region29: #{clip_classifier_forward.1} parent=1 // pred_fallthru
      _
    // Predicated region
    $region30: #{clip_classifier_forward.1} parent=1 // pred_check
      _
    $region31: #{clip_classifier_forward.1} parent=1 // pred_check_branch
      %52 = sbr.rel (0) target = $region33
    $region32: #{clip_classifier_forward.1} parent=1 // pred_region
      _
    $region33: #{clip_classifier_forward.1} parent=1 // pred_fallthru
      _
    // Predicated region
    $region34: #{clip_classifier_forward.1} parent=1 // pred_check
      _
    $region35: #{clip_classifier_forward.1} parent=1 // pred_check_branch
      %54 = sbr.rel (0) target = $region37
    $region36: #{clip_classifier_forward.1} parent=1 // pred_region
      %s56 = ssub.s32 4096, 4096
      %57 = vsyncadd [#allocation5], %s56
      %s58 = sshll.u32 [#allocation6], 4
      %s59 = int_to_ptr.vmem [resolvable:$true] %s58
      %64 = dma.hbm_to_vmem [thread:$0]  %s8, 4096, %s59, [#allocation5], 64, 64, 4
    $region37: #{clip_classifier_forward.1} parent=1 // pred_fallthru
      _
    // Predicated region
    $region38: #{clip_classifier_forward.1} parent=1 // pred_check
      _
    $region39: #{clip_classifier_forward.1} parent=1 // pred_check_branch
      %66 = sbr.rel (0) target = $region41
    $region40: #{clip_classifier_forward.1} parent=1 // pred_region
      _
    $region41: #{clip_classifier_forward.1} parent=1 // pred_fallthru
      _
    // Predicated region
    $region42: #{clip_classifier_forward.1} parent=1 // pred_check
      _
    $region43: #{clip_classifier_forward.1} parent=1 // pred_check_branch
      %68 = sbr.rel (0) target = $region45
    $region44: #{clip_classifier_forward.1} parent=1 // pred_region
      %69 = dma.done [#allocation3], 16384
    $region45: #{clip_classifier_forward.1} parent=1 // pred_fallthru
      _
    // Predicated region
    $region46: #{clip_classifier_forward.1} parent=1 // pred_check
      _
    $region47: #{clip_classifier_forward.1} parent=1 // pred_check_branch
      %71 = sbr.rel (0) target = $region49
    $region48: #{clip_classifier_forward.1} parent=1 // pred_region
      %72 = dma.done [#allocation5], 16384
    $region49: #{clip_classifier_forward.1} parent=1 // pred_fallthru
      _
    // Predicated region
    $region50: #{clip_classifier_forward.1} parent=1 // pred_check
      _
    $region51: #{clip_classifier_forward.1} parent=1 // pred_check_branch
      %74 = sbr.rel (0) target = $region53
    $region52: #{clip_classifier_forward.1} parent=1 // pred_region
      %75 = dma.done [#allocation5], 4096
    $region53: #{clip_classifier_forward.1} parent=1 // pred_fallthru
      _
    %v77 = vld [vmem:[%s3] sm:$0xf]
    %v78 = vld [vmem:[%s0] sm:$0xff]
    %v79 = vld [vmem:[%s0 + $0x8] sm:$0xff]
    %v80 = vunpack.c.l.bf16 %v78
    %v81 = vunpack.c.h.bf16 %v78
    %v82 = vunpack.c.l.bf16 %v79
    %v83 = vunpack.c.h.bf16 %v79
    %v84 = vld [vmem:[%s1] sm:$0xff]
    %v85 = vld [vmem:[%s1 + $0x8] sm:$0xff]
    %v86 = vunpack.c.l.bf16 %v84
    %v87 = vunpack.c.h.bf16 %v84
    %v88 = vunpack.c.l.bf16 %v85
    %v89 = vunpack.c.h.bf16 %v85
    %v90 = vld [vmem:[%s2] sm:$0xff]
    %v91 = vld [vmem:[%s2 + $0x8] sm:$0xff]
    %v92 = vunpack.c.l.bf16 %v90
    %v93 = vunpack.c.h.bf16 %v90
    %v94 = vunpack.c.l.bf16 %v91
    %v95 = vunpack.c.h.bf16 %v91
    %v97 = vlaneseq
    %v98 = vshrl.u32 %v97, 7
    %v99 = vsub.s32 0, %v98
    %v100 = vrot.slane %v77, %v99
    %v101 = vlaneseq
    %v102 = vshrl.u32 %v101, 7
    %v103 = vsub.s32 1, %v102
    %v104 = vrot.slane %v77, %v103
    %v105 = vlaneseq
    %v106 = vshrl.u32 %v105, 7
    %v107 = vsub.s32 2, %v106
    %v108 = vrot.slane %v77, %v107
    %v109 = vlaneseq
    %v110 = vshrl.u32 %v109, 7
    %v111 = vsub.s32 3, %v110
    %v112 = vrot.slane %v77, %v111
    %v117 = vmul.f32 %v80, %v100
    %v118 = vmul.f32 %v81, %v104
    %v119 = vmul.f32 %v82, %v108
    %v120 = vmul.f32 %v83, %v112
    %v121 = vadd.f32 %v117, %v118
    %v122 = vadd.f32 %v121, %v119
    %v123 = vadd.f32 %v122, %v120
    %124 = vadd.xlane.f32.xlu0 %v123
    %v125 = vpop.xlane.xlu0 %124
    %v126 = vmul.f32 %v86, %v100
    %v127 = vmul.f32 %v87, %v104
    %v128 = vmul.f32 %v88, %v108
    %v129 = vmul.f32 %v89, %v112
    %v130 = vadd.f32 %v126, %v127
    %v131 = vadd.f32 %v130, %v128
    %v132 = vadd.f32 %v131, %v129
    %133 = vadd.xlane.f32.xlu0 %v132
    %v134 = vpop.xlane.xlu0 %133
    %v135 = vmul.f32 %v92, %v100
    %v136 = vmul.f32 %v93, %v104
    %v137 = vmul.f32 %v94, %v108
    %v138 = vmul.f32 %v95, %v112
    %v139 = vadd.f32 %v135, %v136
    %v140 = vadd.f32 %v139, %v137
    %v141 = vadd.f32 %v140, %v138
    %142 = vadd.xlane.f32.xlu0 %v141
    %v143 = vpop.xlane.xlu0 %142
    %v144 = vmax.f32 %v125, %v134
    %v145 = vmax.f32 %v144, %v143
    %v146 = vsub.f32 %v125, %v145
    %v147 = vmul.f32 %v146, 1.442695
    %v148 = vpow.pop %v147
    %v149 = vsub.f32 %v134, %v145
    %v150 = vmul.f32 %v149, 1.442695
    %v151 = vpow.pop %v150
    %v152 = vsub.f32 %v143, %v145
    %v153 = vmul.f32 %v152, 1.442695
    %v154 = vpow.pop %v153
    %v155 = vadd.f32 %v148, %v151
    %v156 = vadd.f32 %v155, %v154
    %v157 = vrcp.pop %v156
    %v158 = vmul.f32 %v148, %v157
    %v159 = vmul.f32 %v158, %v80
    %v160 = vmul.f32 %v158, %v81
    %v161 = vmul.f32 %v158, %v82
    %v162 = vmul.f32 %v158, %v83
    %v163 = vmul.f32 %v151, %v157
    %v164 = vmul.f32 %v163, %v86
    %v165 = vmul.f32 %v163, %v87
    %v166 = vmul.f32 %v163, %v88
    %v167 = vmul.f32 %v163, %v89
    %v168 = vadd.f32 %v159, %v164
    %v169 = vadd.f32 %v160, %v165
    %v170 = vadd.f32 %v161, %v166
    %v171 = vadd.f32 %v162, %v167
    %v172 = vmul.f32 %v154, %v157
    %v173 = vmul.f32 %v172, %v92
    %v174 = vmul.f32 %v172, %v93
    %v175 = vmul.f32 %v172, %v94
    %v176 = vmul.f32 %v172, %v95
    %v177 = vadd.f32 %v168, %v173
    %v178 = vadd.f32 %v169, %v174
    %v179 = vadd.f32 %v170, %v175
    %v180 = vadd.f32 %v171, %v176
    %v181 = vpack.c.bf16 %v177, %v177
    %v182 = vpack.c.bf16 %v178, %v178
    %v183 = vpack.c.bf16 %v179, %v179
    %v184 = vpack.c.bf16 %v180, %v180
    %v185 = vld [vmem:[#allocation2] sm:$0xff]
    %v186 = vld [vmem:[#allocation2 + $0x8] sm:$0xff]
    %v187 = vld [vmem:[#allocation2 + $0x10] sm:$0xff]
    %v188 = vld [vmem:[#allocation2 + $0x18] sm:$0xff]
    %v189 = vld [vmem:[#allocation2 + $0x20] sm:$0xff]
    %v190 = vld [vmem:[#allocation2 + $0x28] sm:$0xff]
    %v191 = vld [vmem:[#allocation2 + $0x30] sm:$0xff]
    %v192 = vld [vmem:[#allocation2 + $0x38] sm:$0xff]
    %v193 = vld [vmem:[#allocation2 + $0x40] sm:$0xff]
    %v194 = vld [vmem:[#allocation2 + $0x48] sm:$0xff]
    %v195 = vld [vmem:[#allocation2 + $0x50] sm:$0xff]
    %v196 = vld [vmem:[#allocation2 + $0x58] sm:$0xff]
    %v197 = vld [vmem:[#allocation2 + $0x60] sm:$0xff]
    %v198 = vld [vmem:[#allocation2 + $0x68] sm:$0xff]
    %v199 = vld [vmem:[#allocation2 + $0x70] sm:$0xff]
    %v200 = vld [vmem:[#allocation2 + $0x78] sm:$0xff]
    %v201 = vld [vmem:[#allocation2 + $0x80] sm:$0xff]
    %v202 = vld [vmem:[#allocation2 + $0x88] sm:$0xff]
    %v203 = vld [vmem:[#allocation2 + $0x90] sm:$0xff]
    %v204 = vld [vmem:[#allocation2 + $0x98] sm:$0xff]
    %v205 = vld [vmem:[#allocation2 + $0xa0] sm:$0xff]
    %v206 = vld [vmem:[#allocation2 + $0xa8] sm:$0xff]
    %v207 = vld [vmem:[#allocation2 + $0xb0] sm:$0xff]
    %v208 = vld [vmem:[#allocation2 + $0xb8] sm:$0xff]
    %v209 = vld [vmem:[#allocation2 + $0xc0] sm:$0xff]
    %v210 = vld [vmem:[#allocation2 + $0xc8] sm:$0xff]
    %v211 = vld [vmem:[#allocation2 + $0xd0] sm:$0xff]
    %v212 = vld [vmem:[#allocation2 + $0xd8] sm:$0xff]
    %v213 = vld [vmem:[#allocation2 + $0xe0] sm:$0xff]
    %v214 = vld [vmem:[#allocation2 + $0xe8] sm:$0xff]
    %v215 = vld [vmem:[#allocation2 + $0xf0] sm:$0xff]
    %v216 = vld [vmem:[#allocation2 + $0xf8] sm:$0xff]
    %v217 = vld [vmem:[#allocation2 + $0x100] sm:$0xff]
    %v218 = vld [vmem:[#allocation2 + $0x108] sm:$0xff]
    %v219 = vld [vmem:[#allocation2 + $0x110] sm:$0xff]
    %v220 = vld [vmem:[#allocation2 + $0x118] sm:$0xff]
    %v221 = vld [vmem:[#allocation2 + $0x120] sm:$0xff]
    %v222 = vld [vmem:[#allocation2 + $0x128] sm:$0xff]
    %v223 = vld [vmem:[#allocation2 + $0x130] sm:$0xff]
    %v224 = vld [vmem:[#allocation2 + $0x138] sm:$0xff]
    %v225 = vld [vmem:[#allocation2 + $0x140] sm:$0xff]
    %v226 = vld [vmem:[#allocation2 + $0x148] sm:$0xff]
    %v227 = vld [vmem:[#allocation2 + $0x150] sm:$0xff]
    %v228 = vld [vmem:[#allocation2 + $0x158] sm:$0xff]
    %v229 = vld [vmem:[#allocation2 + $0x160] sm:$0xff]
    %v230 = vld [vmem:[#allocation2 + $0x168] sm:$0xff]
    %v231 = vld [vmem:[#allocation2 + $0x170] sm:$0xff]
    %v232 = vld [vmem:[#allocation2 + $0x178] sm:$0xff]
    %v233 = vld [vmem:[#allocation2 + $0x180] sm:$0xff]
    %v234 = vld [vmem:[#allocation2 + $0x188] sm:$0xff]
    %v235 = vld [vmem:[#allocation2 + $0x190] sm:$0xff]
    %v236 = vld [vmem:[#allocation2 + $0x198] sm:$0xff]
    %v237 = vld [vmem:[#allocation2 + $0x1a0] sm:$0xff]
    %v238 = vld [vmem:[#allocation2 + $0x1a8] sm:$0xff]
    %v239 = vld [vmem:[#allocation2 + $0x1b0] sm:$0xff]
    %v240 = vld [vmem:[#allocation2 + $0x1b8] sm:$0xff]
    %v241 = vld [vmem:[#allocation2 + $0x1c0] sm:$0xff]
    %v242 = vld [vmem:[#allocation2 + $0x1c8] sm:$0xff]
    %v243 = vld [vmem:[#allocation2 + $0x1d0] sm:$0xff]
    %v244 = vld [vmem:[#allocation2 + $0x1d8] sm:$0xff]
    %v245 = vld [vmem:[#allocation2 + $0x1e0] sm:$0xff]
    %v246 = vld [vmem:[#allocation2 + $0x1e8] sm:$0xff]
    %v247 = vld [vmem:[#allocation2 + $0x1f0] sm:$0xff]
    %v248 = vld [vmem:[#allocation2 + $0x1f8] sm:$0xff]
    %v249 = vld [vmem:[#allocation2 + $0x200] sm:$0xff]
    %v250 = vld [vmem:[#allocation2 + $0x208] sm:$0xff]
    %v251 = vld [vmem:[#allocation2 + $0x210] sm:$0xff]
    %v252 = vld [vmem:[#allocation2 + $0x218] sm:$0xff]
    %v253 = vld [vmem:[#allocation2 + $0x220] sm:$0xff]
    %v254 = vld [vmem:[#allocation2 + $0x228] sm:$0xff]
    %v255 = vld [vmem:[#allocation2 + $0x230] sm:$0xff]
    %v256 = vld [vmem:[#allocation2 + $0x238] sm:$0xff]
    %v257 = vld [vmem:[#allocation2 + $0x240] sm:$0xff]
    %v258 = vld [vmem:[#allocation2 + $0x248] sm:$0xff]
    %v259 = vld [vmem:[#allocation2 + $0x250] sm:$0xff]
    %v260 = vld [vmem:[#allocation2 + $0x258] sm:$0xff]
    %v261 = vld [vmem:[#allocation2 + $0x260] sm:$0xff]
    %v262 = vld [vmem:[#allocation2 + $0x268] sm:$0xff]
    %v263 = vld [vmem:[#allocation2 + $0x270] sm:$0xff]
    %v264 = vld [vmem:[#allocation2 + $0x278] sm:$0xff]
    %v265 = vld [vmem:[#allocation2 + $0x280] sm:$0xff]
    %v266 = vld [vmem:[#allocation2 + $0x288] sm:$0xff]
    %v267 = vld [vmem:[#allocation2 + $0x290] sm:$0xff]
    %v268 = vld [vmem:[#allocation2 + $0x298] sm:$0xff]
    %v269 = vld [vmem:[#allocation2 + $0x2a0] sm:$0xff]
    %v270 = vld [vmem:[#allocation2 + $0x2a8] sm:$0xff]
    %v271 = vld [vmem:[#allocation2 + $0x2b0] sm:$0xff]
    %v272 = vld [vmem:[#allocation2 + $0x2b8] sm:$0xff]
    %v273 = vld [vmem:[#allocation2 + $0x2c0] sm:$0xff]
    %v274 = vld [vmem:[#allocation2 + $0x2c8] sm:$0xff]
    %v275 = vld [vmem:[#allocation2 + $0x2d0] sm:$0xff]
    %v276 = vld [vmem:[#allocation2 + $0x2d8] sm:$0xff]
    %v277 = vld [vmem:[#allocation2 + $0x2e0] sm:$0xff]
    %v278 = vld [vmem:[#allocation2 + $0x2e8] sm:$0xff]
    %v279 = vld [vmem:[#allocation2 + $0x2f0] sm:$0xff]
    %v280 = vld [vmem:[#allocation2 + $0x2f8] sm:$0xff]
    %v281 = vld [vmem:[#allocation2 + $0x300] sm:$0xff]
    %v282 = vld [vmem:[#allocation2 + $0x308] sm:$0xff]
    %v283 = vld [vmem:[#allocation2 + $0x310] sm:$0xff]
    %v284 = vld [vmem:[#allocation2 + $0x318] sm:$0xff]
    %v285 = vld [vmem:[#allocation2 + $0x320] sm:$0xff]
    %v286 = vld [vmem:[#allocation2 + $0x328] sm:$0xff]
    %v287 = vld [vmem:[#allocation2 + $0x330] sm:$0xff]
    %v288 = vld [vmem:[#allocation2 + $0x338] sm:$0xff]
    %v289 = vld [vmem:[#allocation2 + $0x340] sm:$0xff]
    %v290 = vld [vmem:[#allocation2 + $0x348] sm:$0xff]
    %v291 = vld [vmem:[#allocation2 + $0x350] sm:$0xff]
    %v292 = vld [vmem:[#allocation2 + $0x358] sm:$0xff]
    %v293 = vld [vmem:[#allocation2 + $0x360] sm:$0xff]
    %v294 = vld [vmem:[#allocation2 + $0x368] sm:$0xff]
    %v295 = vld [vmem:[#allocation2 + $0x370] sm:$0xff]
    %v296 = vld [vmem:[#allocation2 + $0x378] sm:$0xff]
    %v297 = vld [vmem:[#allocation2 + $0x380] sm:$0xff]
    %v298 = vld [vmem:[#allocation2 + $0x388] sm:$0xff]
    %v299 = vld [vmem:[#allocation2 + $0x390] sm:$0xff]
    %v300 = vld [vmem:[#allocation2 + $0x398] sm:$0xff]
    %v301 = vld [vmem:[#allocation2 + $0x3a0] sm:$0xff]
    %v302 = vld [vmem:[#allocation2 + $0x3a8] sm:$0xff]
    %v303 = vld [vmem:[#allocation2 + $0x3b0] sm:$0xff]
    %v304 = vld [vmem:[#allocation2 + $0x3b8] sm:$0xff]
    %v305 = vld [vmem:[#allocation2 + $0x3c0] sm:$0xff]
    %v306 = vld [vmem:[#allocation2 + $0x3c8] sm:$0xff]
    %v307 = vld [vmem:[#allocation2 + $0x3d0] sm:$0xff]
    %v308 = vld [vmem:[#allocation2 + $0x3d8] sm:$0xff]
    %v309 = vld [vmem:[#allocation2 + $0x3e0] sm:$0xff]
    %v310 = vld [vmem:[#allocation2 + $0x3e8] sm:$0xff]
    %v311 = vld [vmem:[#allocation2 + $0x3f0] sm:$0xff]
    %v312 = vld [vmem:[#allocation2 + $0x3f8] sm:$0xff]
    %v313 = vld [vmem:[%s5] sm:$0xf]
    %v315 = vlaneseq
    %v316 = vshrl.u32 %v315, 7
    %v317 = vsub.s32 0, %v316
    %v318 = vrot.slane %v313, %v317
    %v319 = vlaneseq
    %v320 = vshrl.u32 %v319, 7
    %v321 = vsub.s32 1, %v320
    %v322 = vrot.slane %v313, %v321
    %v323 = vlaneseq
    %v324 = vshrl.u32 %v323, 7
    %v325 = vsub.s32 2, %v324
    %v326 = vrot.slane %v313, %v325
    %v327 = vlaneseq
    %v328 = vshrl.u32 %v327, 7
    %v329 = vsub.s32 3, %v328
    %v330 = vrot.slane %v313, %v329
    %v463 = vunpack.c.l.b16 %v185
    %v464 = vunpack.c.h.b16 %v185
    %v465 = vunpack.c.l.b16 %v186
    %v466 = vunpack.c.h.b16 %v186
    %v467 = vunpack.c.l.b16 %v187
    %v468 = vunpack.c.h.b16 %v187
    %v469 = vunpack.c.l.b16 %v188
    %v470 = vunpack.c.h.b16 %v188
    %v471 = vunpack.c.l.b16 %v189
    %v472 = vunpack.c.h.b16 %v189
    %v473 = vunpack.c.l.b16 %v190
    %v474 = vunpack.c.h.b16 %v190
    %v475 = vunpack.c.l.b16 %v191
    %v476 = vunpack.c.h.b16 %v191
    %v477 = vunpack.c.l.b16 %v192
    %v478 = vunpack.c.h.b16 %v192
    %v479 = vunpack.c.l.b16 %v193
    %v480 = vunpack.c.h.b16 %v193
    %v481 = vunpack.c.l.b16 %v194
    %v482 = vunpack.c.h.b16 %v194
    %v483 = vunpack.c.l.b16 %v195
    %v484 = vunpack.c.h.b16 %v195
    %v485 = vunpack.c.l.b16 %v196
    %v486 = vunpack.c.h.b16 %v196
    %v487 = vunpack.c.l.b16 %v197
    %v488 = vunpack.c.h.b16 %v197
    %v489 = vunpack.c.l.b16 %v198
    %v490 = vunpack.c.h.b16 %v198
    %v491 = vunpack.c.l.b16 %v199
    %v492 = vunpack.c.h.b16 %v199
    %v493 = vunpack.c.l.b16 %v200
    %v494 = vunpack.c.h.b16 %v200
    %v495 = vunpack.c.l.b16 %v201
    %v496 = vunpack.c.h.b16 %v201
    %v497 = vunpack.c.l.b16 %v202
    %v498 = vunpack.c.h.b16 %v202
    %v499 = vunpack.c.l.b16 %v203
    %v500 = vunpack.c.h.b16 %v203
    %v501 = vunpack.c.l.b16 %v204
    %v502 = vunpack.c.h.b16 %v204
    %v503 = vunpack.c.l.b16 %v205
    %v504 = vunpack.c.h.b16 %v205
    %v505 = vunpack.c.l.b16 %v206
    %v506 = vunpack.c.h.b16 %v206
    %v507 = vunpack.c.l.b16 %v207
    %v508 = vunpack.c.h.b16 %v207
    %v509 = vunpack.c.l.b16 %v208
    %v510 = vunpack.c.h.b16 %v208
    %v511 = vunpack.c.l.b16 %v209
    %v512 = vunpack.c.h.b16 %v209
    %v513 = vunpack.c.l.b16 %v210
    %v514 = vunpack.c.h.b16 %v210
    %v515 = vunpack.c.l.b16 %v211
    %v516 = vunpack.c.h.b16 %v211
    %v517 = vunpack.c.l.b16 %v212
    %v518 = vunpack.c.h.b16 %v212
    %v519 = vunpack.c.l.b16 %v213
    %v520 = vunpack.c.h.b16 %v213
    %v521 = vunpack.c.l.b16 %v214
    %v522 = vunpack.c.h.b16 %v214
    %v523 = vunpack.c.l.b16 %v215
    %v524 = vunpack.c.h.b16 %v215
    %v525 = vunpack.c.l.b16 %v216
    %v526 = vunpack.c.h.b16 %v216
    %v527 = vunpack.c.l.b16 %v217
    %v528 = vunpack.c.h.b16 %v217
    %v529 = vunpack.c.l.b16 %v218
    %v530 = vunpack.c.h.b16 %v218
    %v531 = vunpack.c.l.b16 %v219
    %v532 = vunpack.c.h.b16 %v219
    %v533 = vunpack.c.l.b16 %v220
    %v534 = vunpack.c.h.b16 %v220
    %v535 = vunpack.c.l.b16 %v221
    %v536 = vunpack.c.h.b16 %v221
    %v537 = vunpack.c.l.b16 %v222
    %v538 = vunpack.c.h.b16 %v222
    %v539 = vunpack.c.l.b16 %v223
    %v540 = vunpack.c.h.b16 %v223
    %v541 = vunpack.c.l.b16 %v224
    %v542 = vunpack.c.h.b16 %v224
    %v543 = vunpack.c.l.b16 %v225
    %v544 = vunpack.c.h.b16 %v225
    %v545 = vunpack.c.l.b16 %v226
    %v546 = vunpack.c.h.b16 %v226
    %v547 = vunpack.c.l.b16 %v227
    %v548 = vunpack.c.h.b16 %v227
    %v549 = vunpack.c.l.b16 %v228
    %v550 = vunpack.c.h.b16 %v228
    %v551 = vunpack.c.l.b16 %v229
    %v552 = vunpack.c.h.b16 %v229
    %v553 = vunpack.c.l.b16 %v230
    %v554 = vunpack.c.h.b16 %v230
    %v555 = vunpack.c.l.b16 %v231
    %v556 = vunpack.c.h.b16 %v231
    %v557 = vunpack.c.l.b16 %v232
    %v558 = vunpack.c.h.b16 %v232
    %v559 = vunpack.c.l.b16 %v233
    %v560 = vunpack.c.h.b16 %v233
    %v561 = vunpack.c.l.b16 %v234
    %v562 = vunpack.c.h.b16 %v234
    %v563 = vunpack.c.l.b16 %v235
    %v564 = vunpack.c.h.b16 %v235
    %v565 = vunpack.c.l.b16 %v236
    %v566 = vunpack.c.h.b16 %v236
    %v567 = vunpack.c.l.b16 %v237
    %v568 = vunpack.c.h.b16 %v237
    %v569 = vunpack.c.l.b16 %v238
    %v570 = vunpack.c.h.b16 %v238
    %v571 = vunpack.c.l.b16 %v239
    %v572 = vunpack.c.h.b16 %v239
    %v573 = vunpack.c.l.b16 %v240
    %v574 = vunpack.c.h.b16 %v240
    %v575 = vunpack.c.l.b16 %v241
    %v576 = vunpack.c.h.b16 %v241
    %v577 = vunpack.c.l.b16 %v242
    %v578 = vunpack.c.h.b16 %v242
    %v579 = vunpack.c.l.b16 %v243
    %v580 = vunpack.c.h.b16 %v243
    %v581 = vunpack.c.l.b16 %v244
    %v582 = vunpack.c.h.b16 %v244
    %v583 = vunpack.c.l.b16 %v245
    %v584 = vunpack.c.h.b16 %v245
    %v585 = vunpack.c.l.b16 %v246
    %v586 = vunpack.c.h.b16 %v246
    %v587 = vunpack.c.l.b16 %v247
    %v588 = vunpack.c.h.b16 %v247
    %v589 = vunpack.c.l.b16 %v248
    %v590 = vunpack.c.h.b16 %v248
    %v591 = vunpack.c.l.b16 %v249
    %v592 = vunpack.c.h.b16 %v249
    %v593 = vunpack.c.l.b16 %v250
    %v594 = vunpack.c.h.b16 %v250
    %v595 = vunpack.c.l.b16 %v251
    %v596 = vunpack.c.h.b16 %v251
    %v597 = vunpack.c.l.b16 %v252
    %v598 = vunpack.c.h.b16 %v252
    %v599 = vunpack.c.l.b16 %v253
    %v600 = vunpack.c.h.b16 %v253
    %v601 = vunpack.c.l.b16 %v254
    %v602 = vunpack.c.h.b16 %v254
    %v603 = vunpack.c.l.b16 %v255
    %v604 = vunpack.c.h.b16 %v255
    %v605 = vunpack.c.l.b16 %v256
    %v606 = vunpack.c.h.b16 %v256
    %v607 = vunpack.c.l.b16 %v257
    %v608 = vunpack.c.h.b16 %v257
    %v609 = vunpack.c.l.b16 %v258
    %v610 = vunpack.c.h.b16 %v258
    %v611 = vunpack.c.l.b16 %v259
    %v612 = vunpack.c.h.b16 %v259
    %v613 = vunpack.c.l.b16 %v260
    %v614 = vunpack.c.h.b16 %v260
    %v615 = vunpack.c.l.b16 %v261
    %v616 = vunpack.c.h.b16 %v261
    %v617 = vunpack.c.l.b16 %v262
    %v618 = vunpack.c.h.b16 %v262
    %v619 = vunpack.c.l.b16 %v263
    %v620 = vunpack.c.h.b16 %v263
    %v621 = vunpack.c.l.b16 %v264
    %v622 = vunpack.c.h.b16 %v264
    %v623 = vunpack.c.l.b16 %v265
    %v624 = vunpack.c.h.b16 %v265
    %v625 = vunpack.c.l.b16 %v266
    %v626 = vunpack.c.h.b16 %v266
    %v627 = vunpack.c.l.b16 %v267
    %v628 = vunpack.c.h.b16 %v267
    %v629 = vunpack.c.l.b16 %v268
    %v630 = vunpack.c.h.b16 %v268
    %v631 = vunpack.c.l.b16 %v269
    %v632 = vunpack.c.h.b16 %v269
    %v633 = vunpack.c.l.b16 %v270
    %v634 = vunpack.c.h.b16 %v270
    %v635 = vunpack.c.l.b16 %v271
    %v636 = vunpack.c.h.b16 %v271
    %v637 = vunpack.c.l.b16 %v272
    %v638 = vunpack.c.h.b16 %v272
    %v639 = vunpack.c.l.b16 %v273
    %v640 = vunpack.c.h.b16 %v273
    %v641 = vunpack.c.l.b16 %v274
    %v642 = vunpack.c.h.b16 %v274
    %v643 = vunpack.c.l.b16 %v275
    %v644 = vunpack.c.h.b16 %v275
    %v645 = vunpack.c.l.b16 %v276
    %v646 = vunpack.c.h.b16 %v276
    %v647 = vunpack.c.l.b16 %v277
    %v648 = vunpack.c.h.b16 %v277
    %v649 = vunpack.c.l.b16 %v278
    %v650 = vunpack.c.h.b16 %v278
    %v651 = vunpack.c.l.b16 %v279
    %v652 = vunpack.c.h.b16 %v279
    %v653 = vunpack.c.l.b16 %v280
    %v654 = vunpack.c.h.b16 %v280
    %v655 = vunpack.c.l.b16 %v281
    %v656 = vunpack.c.h.b16 %v281
    %v657 = vunpack.c.l.b16 %v282
    %v658 = vunpack.c.h.b16 %v282
    %v659 = vunpack.c.l.b16 %v283
    %v660 = vunpack.c.h.b16 %v283
    %v661 = vunpack.c.l.b16 %v284
    %v662 = vunpack.c.h.b16 %v284
    %v663 = vunpack.c.l.b16 %v285
    %v664 = vunpack.c.h.b16 %v285
    %v665 = vunpack.c.l.b16 %v286
    %v666 = vunpack.c.h.b16 %v286
    %v667 = vunpack.c.l.b16 %v287
    %v668 = vunpack.c.h.b16 %v287
    %v669 = vunpack.c.l.b16 %v288
    %v670 = vunpack.c.h.b16 %v288
    %v671 = vunpack.c.l.b16 %v289
    %v672 = vunpack.c.h.b16 %v289
    %v673 = vunpack.c.l.b16 %v290
    %v674 = vunpack.c.h.b16 %v290
    %v675 = vunpack.c.l.b16 %v291
    %v676 = vunpack.c.h.b16 %v291
    %v677 = vunpack.c.l.b16 %v292
    %v678 = vunpack.c.h.b16 %v292
    %v679 = vunpack.c.l.b16 %v293
    %v680 = vunpack.c.h.b16 %v293
    %v681 = vunpack.c.l.b16 %v294
    %v682 = vunpack.c.h.b16 %v294
    %v683 = vunpack.c.l.b16 %v295
    %v684 = vunpack.c.h.b16 %v295
    %v685 = vunpack.c.l.b16 %v296
    %v686 = vunpack.c.h.b16 %v296
    %v687 = vunpack.c.l.b16 %v297
    %v688 = vunpack.c.h.b16 %v297
    %v689 = vunpack.c.l.b16 %v298
    %v690 = vunpack.c.h.b16 %v298
    %v691 = vunpack.c.l.b16 %v299
    %v692 = vunpack.c.h.b16 %v299
    %v693 = vunpack.c.l.b16 %v300
    %v694 = vunpack.c.h.b16 %v300
    %v695 = vunpack.c.l.b16 %v301
    %v696 = vunpack.c.h.b16 %v301
    %v697 = vunpack.c.l.b16 %v302
    %v698 = vunpack.c.h.b16 %v302
    %v699 = vunpack.c.l.b16 %v303
    %v700 = vunpack.c.h.b16 %v303
    %v701 = vunpack.c.l.b16 %v304
    %v702 = vunpack.c.h.b16 %v304
    %v703 = vunpack.c.l.b16 %v305
    %v704 = vunpack.c.h.b16 %v305
    %v705 = vunpack.c.l.b16 %v306
    %v706 = vunpack.c.h.b16 %v306
    %v707 = vunpack.c.l.b16 %v307
    %v708 = vunpack.c.h.b16 %v307
    %v709 = vunpack.c.l.b16 %v308
    %v710 = vunpack.c.h.b16 %v308
    %v711 = vunpack.c.l.b16 %v309
    %v712 = vunpack.c.h.b16 %v309
    %v713 = vunpack.c.l.b16 %v310
    %v714 = vunpack.c.h.b16 %v310
    %v715 = vunpack.c.l.b16 %v311
    %v716 = vunpack.c.h.b16 %v311
    %v717 = vunpack.c.l.b16 %v312
    %v718 = vunpack.c.h.b16 %v312
    %v719 = vpack.c.b16 %v467, %v463
    %v720 = vpack.c.b16 %v468, %v464
    %v721 = vpack.c.b16 %v469, %v465
    %v722 = vpack.c.b16 %v470, %v466
    %v723 = vpack.c.b16 %v475, %v471
    %v724 = vpack.c.b16 %v476, %v472
    %v725 = vpack.c.b16 %v477, %v473
    %v726 = vpack.c.b16 %v478, %v474
    %v727 = vpack.c.b16 %v483, %v479
    %v728 = vpack.c.b16 %v484, %v480
    %v729 = vpack.c.b16 %v485, %v481
    %v730 = vpack.c.b16 %v486, %v482
    %v731 = vpack.c.b16 %v491, %v487
    %v732 = vpack.c.b16 %v492, %v488
    %v733 = vpack.c.b16 %v493, %v489
    %v734 = vpack.c.b16 %v494, %v490
    %v735 = vpack.c.b16 %v499, %v495
    %v736 = vpack.c.b16 %v500, %v496
    %v737 = vpack.c.b16 %v501, %v497
    %v738 = vpack.c.b16 %v502, %v498
    %v739 = vpack.c.b16 %v507, %v503
    %v740 = vpack.c.b16 %v508, %v504
    %v741 = vpack.c.b16 %v509, %v505
    %v742 = vpack.c.b16 %v510, %v506
    %v743 = vpack.c.b16 %v515, %v511
    %v744 = vpack.c.b16 %v516, %v512
    %v745 = vpack.c.b16 %v517, %v513
    %v746 = vpack.c.b16 %v518, %v514
    %v747 = vpack.c.b16 %v523, %v519
    %v748 = vpack.c.b16 %v524, %v520
    %v749 = vpack.c.b16 %v525, %v521
    %v750 = vpack.c.b16 %v526, %v522
    %v751 = vpack.c.b16 %v531, %v527
    %v752 = vpack.c.b16 %v532, %v528
    %v753 = vpack.c.b16 %v533, %v529
    %v754 = vpack.c.b16 %v534, %v530
    %v755 = vpack.c.b16 %v539, %v535
    %v756 = vpack.c.b16 %v540, %v536
    %v757 = vpack.c.b16 %v541, %v537
    %v758 = vpack.c.b16 %v542, %v538
    %v759 = vpack.c.b16 %v547, %v543
    %v760 = vpack.c.b16 %v548, %v544
    %v761 = vpack.c.b16 %v549, %v545
    %v762 = vpack.c.b16 %v550, %v546
    %v763 = vpack.c.b16 %v555, %v551
    %v764 = vpack.c.b16 %v556, %v552
    %v765 = vpack.c.b16 %v557, %v553
    %v766 = vpack.c.b16 %v558, %v554
    %v767 = vpack.c.b16 %v563, %v559
    %v768 = vpack.c.b16 %v564, %v560
    %v769 = vpack.c.b16 %v565, %v561
    %v770 = vpack.c.b16 %v566, %v562
    %v771 = vpack.c.b16 %v571, %v567
    %v772 = vpack.c.b16 %v572, %v568
    %v773 = vpack.c.b16 %v573, %v569
    %v774 = vpack.c.b16 %v574, %v570
    %v775 = vpack.c.b16 %v579, %v575
    %v776 = vpack.c.b16 %v580, %v576
    %v777 = vpack.c.b16 %v581, %v577
    %v778 = vpack.c.b16 %v582, %v578
    %v779 = vpack.c.b16 %v587, %v583
    %v780 = vpack.c.b16 %v588, %v584
    %v781 = vpack.c.b16 %v589, %v585
    %v782 = vpack.c.b16 %v590, %v586
    %v783 = vpack.c.b16 %v595, %v591
    %v784 = vpack.c.b16 %v596, %v592
    %v785 = vpack.c.b16 %v597, %v593
    %v786 = vpack.c.b16 %v598, %v594
    %v787 = vpack.c.b16 %v603, %v599
    %v788 = vpack.c.b16 %v604, %v600
    %v789 = vpack.c.b16 %v605, %v601
    %v790 = vpack.c.b16 %v606, %v602
    %v791 = vpack.c.b16 %v611, %v607
    %v792 = vpack.c.b16 %v612, %v608
    %v793 = vpack.c.b16 %v613, %v609
    %v794 = vpack.c.b16 %v614, %v610
    %v795 = vpack.c.b16 %v619, %v615
    %v796 = vpack.c.b16 %v620, %v616
    %v797 = vpack.c.b16 %v621, %v617
    %v798 = vpack.c.b16 %v622, %v618
    %v799 = vpack.c.b16 %v627, %v623
    %v800 = vpack.c.b16 %v628, %v624
    %v801 = vpack.c.b16 %v629, %v625
    %v802 = vpack.c.b16 %v630, %v626
    %v803 = vpack.c.b16 %v635, %v631
    %v804 = vpack.c.b16 %v636, %v632
    %v805 = vpack.c.b16 %v637, %v633
    %v806 = vpack.c.b16 %v638, %v634
    %v807 = vpack.c.b16 %v643, %v639
    %v808 = vpack.c.b16 %v644, %v640
    %v809 = vpack.c.b16 %v645, %v641
    %v810 = vpack.c.b16 %v646, %v642
    %v811 = vpack.c.b16 %v651, %v647
    %v812 = vpack.c.b16 %v652, %v648
    %v813 = vpack.c.b16 %v653, %v649
    %v814 = vpack.c.b16 %v654, %v650
    %v815 = vpack.c.b16 %v659, %v655
    %v816 = vpack.c.b16 %v660, %v656
    %v817 = vpack.c.b16 %v661, %v657
    %v818 = vpack.c.b16 %v662, %v658
    %v819 = vpack.c.b16 %v667, %v663
    %v820 = vpack.c.b16 %v668, %v664
    %v821 = vpack.c.b16 %v669, %v665
    %v822 = vpack.c.b16 %v670, %v666
    %v823 = vpack.c.b16 %v675, %v671
    %v824 = vpack.c.b16 %v676, %v672
    %v825 = vpack.c.b16 %v677, %v673
    %v826 = vpack.c.b16 %v678, %v674
    %v827 = vpack.c.b16 %v683, %v679
    %v828 = vpack.c.b16 %v684, %v680
    %v829 = vpack.c.b16 %v685, %v681
    %v830 = vpack.c.b16 %v686, %v682
    %v831 = vpack.c.b16 %v691, %v687
    %v832 = vpack.c.b16 %v692, %v688
    %v833 = vpack.c.b16 %v693, %v689
    %v834 = vpack.c.b16 %v694, %v690
    %v835 = vpack.c.b16 %v699, %v695
    %v836 = vpack.c.b16 %v700, %v696
    %v837 = vpack.c.b16 %v701, %v697
    %v838 = vpack.c.b16 %v702, %v698
    %v839 = vpack.c.b16 %v707, %v703
    %v840 = vpack.c.b16 %v708, %v704
    %v841 = vpack.c.b16 %v709, %v705
    %v842 = vpack.c.b16 %v710, %v706
    %v843 = vpack.c.b16 %v715, %v711
    %v844 = vpack.c.b16 %v716, %v712
    %v845 = vpack.c.b16 %v717, %v713
    %v846 = vpack.c.b16 %v718, %v714
    %975 = vmatprep.subr.bf16.mxu0 %v720
    %976 = vmatpush1.bf16.msra.mxu0 %v719
    %977 = vmatprep.subr.bf16.mxu0 %v724
    %978 = vmatpush1.bf16.msra.mxu0 %v723
    %979 = vmatprep.subr.bf16.mxu0 %v728
    %980 = vmatpush1.bf16.msra.mxu0 %v727
    %981 = vmatprep.subr.bf16.mxu0 %v732
    %982 = vmatpush1.bf16.msra.mxu0 %v731
    %983 = vmatprep.subr.bf16.mxu0 %v736
    %984 = vmatpush1.bf16.msra.mxu0 %v735
    %985 = vmatprep.subr.bf16.mxu0 %v740
    %986 = vmatpush1.bf16.msra.mxu0 %v739
    %987 = vmatprep.subr.bf16.mxu0 %v744
    %988 = vmatpush1.bf16.msra.mxu0 %v743
    %989 = vmatprep.subr.bf16.mxu0 %v748
    %990 = vmatpush1.bf16.msra.mxu0 %v747
    %991 = vmatprep.subr.bf16.mxu0 %v752
    %992 = vmatpush1.bf16.msra.mxu0 %v751
    %993 = vmatprep.subr.bf16.mxu0 %v756
    %994 = vmatpush1.bf16.msra.mxu0 %v755
    %995 = vmatprep.subr.bf16.mxu0 %v760
    %996 = vmatpush1.bf16.msra.mxu0 %v759
    %997 = vmatprep.subr.bf16.mxu0 %v764
    %998 = vmatpush1.bf16.msra.mxu0 %v763
    %999 = vmatprep.subr.bf16.mxu0 %v768
    %1000 = vmatpush1.bf16.msra.mxu0 %v767
    %1001 = vmatprep.subr.bf16.mxu0 %v772
    %1002 = vmatpush1.bf16.msra.mxu0 %v771
    %1003 = vmatprep.subr.bf16.mxu0 %v776
    %1004 = vmatpush1.bf16.msra.mxu0 %v775
    %1005 = vmatprep.subr.bf16.mxu0 %v780
    %1006 = vmatpush1.bf16.msra.mxu0 %v779
    %1007 = vmatprep.mubr.bf16.mxu0 %v182
    %1008 = vmatmul.mubr.bf16.gmra.mrb[0].mxu0 %v181
    %v1009 = vpop.f32.mrb[0].mxu0
    %v1010 = vadd.f32 %v318, %v1009
    %v1011 = vpop.f32.mrb[0].mxu0
    %v1012 = vadd.f32 %v322, %v1011
    %v1013 = vpop.f32.mrb[0].mxu0
    %v1014 = vpop.f32.mrb[0].mxu0
    %1015 = vdwg.mxu0
    %1016 = vmatprep.subr.bf16.mxu0 %v784
    %1017 = vmatpush1.bf16.msra.mxu0 %v783
    %1018 = vmatprep.subr.bf16.mxu0 %v788
    %1019 = vmatpush1.bf16.msra.mxu0 %v787
    %1020 = vmatprep.subr.bf16.mxu0 %v792
    %1021 = vmatpush1.bf16.msra.mxu0 %v791
    %1022 = vmatprep.subr.bf16.mxu0 %v796
    %1023 = vmatpush1.bf16.msra.mxu0 %v795
    %1024 = vmatprep.subr.bf16.mxu0 %v800
    %1025 = vmatpush1.bf16.msra.mxu0 %v799
    %1026 = vmatprep.subr.bf16.mxu0 %v804
    %1027 = vmatpush1.bf16.msra.mxu0 %v803
    %1028 = vmatprep.subr.bf16.mxu0 %v808
    %1029 = vmatpush1.bf16.msra.mxu0 %v807
    %1030 = vmatprep.subr.bf16.mxu0 %v812
    %1031 = vmatpush1.bf16.msra.mxu0 %v811
    %1032 = vmatprep.subr.bf16.mxu0 %v816
    %1033 = vmatpush1.bf16.msra.mxu0 %v815
    %1034 = vmatprep.subr.bf16.mxu0 %v820
    %1035 = vmatpush1.bf16.msra.mxu0 %v819
    %1036 = vmatprep.subr.bf16.mxu0 %v824
    %1037 = vmatpush1.bf16.msra.mxu0 %v823
    %1038 = vmatprep.subr.bf16.mxu0 %v828
    %1039 = vmatpush1.bf16.msra.mxu0 %v827
    %1040 = vmatprep.subr.bf16.mxu0 %v832
    %1041 = vmatpush1.bf16.msra.mxu0 %v831
    %1042 = vmatprep.subr.bf16.mxu0 %v836
    %1043 = vmatpush1.bf16.msra.mxu0 %v835
    %1044 = vmatprep.subr.bf16.mxu0 %v840
    %1045 = vmatpush1.bf16.msra.mxu0 %v839
    %1046 = vmatprep.subr.bf16.mxu0 %v844
    %1047 = vmatpush1.bf16.msra.mxu0 %v843
    %1048 = vmatprep.mubr.bf16.mxu0 %v184
    %1049 = vmatmul.mubr.bf16.gmra.mrb[0].mxu0 %v183
    %v1050 = vpop.f32.mrb[0].mxu0
    %v1051 = vadd.f32 %v1010, %v1050
    %v1052 = vpop.f32.mrb[0].mxu0
    %v1053 = vadd.f32 %v1012, %v1052
    %v1054 = vpop.f32.mrb[0].mxu0
    %v1055 = vpop.f32.mrb[0].mxu0
    %1056 = vdwg.mxu0
    %1057 = vmatprep.subr.bf16.mxu0 %v722
    %1058 = vmatpush1.bf16.msra.mxu0 %v721
    %1059 = vmatprep.subr.bf16.mxu0 %v726
    %1060 = vmatpush1.bf16.msra.mxu0 %v725
    %1061 = vmatprep.subr.bf16.mxu0 %v730
    %1062 = vmatpush1.bf16.msra.mxu0 %v729
    %1063 = vmatprep.subr.bf16.mxu0 %v734
    %1064 = vmatpush1.bf16.msra.mxu0 %v733
    %1065 = vmatprep.subr.bf16.mxu0 %v738
    %1066 = vmatpush1.bf16.msra.mxu0 %v737
    %1067 = vmatprep.subr.bf16.mxu0 %v742
    %1068 = vmatpush1.bf16.msra.mxu0 %v741
    %1069 = vmatprep.subr.bf16.mxu0 %v746
    %1070 = vmatpush1.bf16.msra.mxu0 %v745
    %1071 = vmatprep.subr.bf16.mxu0 %v750
    %1072 = vmatpush1.bf16.msra.mxu0 %v749
    %1073 = vmatprep.subr.bf16.mxu0 %v754
    %1074 = vmatpush1.bf16.msra.mxu0 %v753
    %1075 = vmatprep.subr.bf16.mxu0 %v758
    %1076 = vmatpush1.bf16.msra.mxu0 %v757
    %1077 = vmatprep.subr.bf16.mxu0 %v762
    %1078 = vmatpush1.bf16.msra.mxu0 %v761
    %1079 = vmatprep.subr.bf16.mxu0 %v766
    %1080 = vmatpush1.bf16.msra.mxu0 %v765
    %1081 = vmatprep.subr.bf16.mxu0 %v770
    %1082 = vmatpush1.bf16.msra.mxu0 %v769
    %1083 = vmatprep.subr.bf16.mxu0 %v774
    %1084 = vmatpush1.bf16.msra.mxu0 %v773
    %1085 = vmatprep.subr.bf16.mxu0 %v778
    %1086 = vmatpush1.bf16.msra.mxu0 %v777
    %1087 = vmatprep.subr.bf16.mxu0 %v782
    %1088 = vmatpush1.bf16.msra.mxu0 %v781
    %1089 = vmatprep.mubr.bf16.mxu0 %v182
    %1090 = vmatmul.mubr.bf16.gmra.mrb[0].mxu0 %v181
    %v1091 = vpop.f32.mrb[0].mxu0
    %v1092 = vadd.f32 %v326, %v1091
    %v1093 = vpop.f32.mrb[0].mxu0
    %v1094 = vadd.f32 %v330, %v1093
    %v1095 = vpop.f32.mrb[0].mxu0
    %v1096 = vpop.f32.mrb[0].mxu0
    %1097 = vdwg.mxu0
    %1098 = vmatprep.subr.bf16.mxu0 %v786
    %1099 = vmatpush1.bf16.msra.mxu0 %v785
    %1100 = vmatprep.subr.bf16.mxu0 %v790
    %1101 = vmatpush1.bf16.msra.mxu0 %v789
    %1102 = vmatprep.subr.bf16.mxu0 %v794
    %1103 = vmatpush1.bf16.msra.mxu0 %v793
    %1104 = vmatprep.subr.bf16.mxu0 %v798
    %1105 = vmatpush1.bf16.msra.mxu0 %v797
    %1106 = vmatprep.subr.bf16.mxu0 %v802
    %1107 = vmatpush1.bf16.msra.mxu0 %v801
    %1108 = vmatprep.subr.bf16.mxu0 %v806
    %1109 = vmatpush1.bf16.msra.mxu0 %v805
    %1110 = vmatprep.subr.bf16.mxu0 %v810
    %1111 = vmatpush1.bf16.msra.mxu0 %v809
    %1112 = vmatprep.subr.bf16.mxu0 %v814
    %1113 = vmatpush1.bf16.msra.mxu0 %v813
    %1114 = vmatprep.subr.bf16.mxu0 %v818
    %1115 = vmatpush1.bf16.msra.mxu0 %v817
    %1116 = vmatprep.subr.bf16.mxu0 %v822
    %1117 = vmatpush1.bf16.msra.mxu0 %v821
    %1118 = vmatprep.subr.bf16.mxu0 %v826
    %1119 = vmatpush1.bf16.msra.mxu0 %v825
    %1120 = vmatprep.subr.bf16.mxu0 %v830
    %1121 = vmatpush1.bf16.msra.mxu0 %v829
    %1122 = vmatprep.subr.bf16.mxu0 %v834
    %1123 = vmatpush1.bf16.msra.mxu0 %v833
    %1124 = vmatprep.subr.bf16.mxu0 %v838
    %1125 = vmatpush1.bf16.msra.mxu0 %v837
    %1126 = vmatprep.subr.bf16.mxu0 %v842
    %1127 = vmatpush1.bf16.msra.mxu0 %v841
    %1128 = vmatprep.subr.bf16.mxu0 %v846
    %1129 = vmatpush1.bf16.msra.mxu0 %v845
    %1130 = vmatprep.mubr.bf16.mxu0 %v184
    %1131 = vmatmul.mubr.bf16.gmra.mrb[0].mxu0 %v183
    %v1132 = vpop.f32.mrb[0].mxu0
    %v1133 = vadd.f32 %v1092, %v1132
    %v1134 = vpop.f32.mrb[0].mxu0
    %v1135 = vadd.f32 %v1094, %v1134
    %v1136 = vpop.f32.mrb[0].mxu0
    %v1137 = vpop.f32.mrb[0].mxu0
    %1138 = vdwg.mxu0
    %v1139 = vmax.f32 %v1051, 0.0
    %v1140 = vmax.f32 %v1053, 0.0
    %v1141 = vmax.f32 %v1133, 0.0
    %v1142 = vmax.f32 %v1135, 0.0
    %v1143 = vpack.c.bf16 %v1139, %v1139
    %v1144 = vpack.c.bf16 %v1140, %v1140
    %v1145 = vpack.c.bf16 %v1141, %v1141
    %v1146 = vpack.c.bf16 %v1142, %v1142
    %v1147 = vld [vmem:[#allocation4] sm:$0xff]
    %v1148 = vld [vmem:[#allocation4 + $0x8] sm:$0xff]
    %v1149 = vld [vmem:[#allocation4 + $0x10] sm:$0xff]
    %v1150 = vld [vmem:[#allocation4 + $0x18] sm:$0xff]
    %v1151 = vld [vmem:[#allocation4 + $0x20] sm:$0xff]
    %v1152 = vld [vmem:[#allocation4 + $0x28] sm:$0xff]
    %v1153 = vld [vmem:[#allocation4 + $0x30] sm:$0xff]
    %v1154 = vld [vmem:[#allocation4 + $0x38] sm:$0xff]
    %v1155 = vld [vmem:[#allocation4 + $0x40] sm:$0xff]
    %v1156 = vld [vmem:[#allocation4 + $0x48] sm:$0xff]
    %v1157 = vld [vmem:[#allocation4 + $0x50] sm:$0xff]
    %v1158 = vld [vmem:[#allocation4 + $0x58] sm:$0xff]
    %v1159 = vld [vmem:[#allocation4 + $0x60] sm:$0xff]
    %v1160 = vld [vmem:[#allocation4 + $0x68] sm:$0xff]
    %v1161 = vld [vmem:[#allocation4 + $0x70] sm:$0xff]
    %v1162 = vld [vmem:[#allocation4 + $0x78] sm:$0xff]
    %v1163 = vld [vmem:[#allocation4 + $0x80] sm:$0xff]
    %v1164 = vld [vmem:[#allocation4 + $0x88] sm:$0xff]
    %v1165 = vld [vmem:[#allocation4 + $0x90] sm:$0xff]
    %v1166 = vld [vmem:[#allocation4 + $0x98] sm:$0xff]
    %v1167 = vld [vmem:[#allocation4 + $0xa0] sm:$0xff]
    %v1168 = vld [vmem:[#allocation4 + $0xa8] sm:$0xff]
    %v1169 = vld [vmem:[#allocation4 + $0xb0] sm:$0xff]
    %v1170 = vld [vmem:[#allocation4 + $0xb8] sm:$0xff]
    %v1171 = vld [vmem:[#allocation4 + $0xc0] sm:$0xff]
    %v1172 = vld [vmem:[#allocation4 + $0xc8] sm:$0xff]
    %v1173 = vld [vmem:[#allocation4 + $0xd0] sm:$0xff]
    %v1174 = vld [vmem:[#allocation4 + $0xd8] sm:$0xff]
    %v1175 = vld [vmem:[#allocation4 + $0xe0] sm:$0xff]
    %v1176 = vld [vmem:[#allocation4 + $0xe8] sm:$0xff]
    %v1177 = vld [vmem:[#allocation4 + $0xf0] sm:$0xff]
    %v1178 = vld [vmem:[#allocation4 + $0xf8] sm:$0xff]
    %v1179 = vld [vmem:[#allocation4 + $0x100] sm:$0xff]
    %v1180 = vld [vmem:[#allocation4 + $0x108] sm:$0xff]
    %v1181 = vld [vmem:[#allocation4 + $0x110] sm:$0xff]
    %v1182 = vld [vmem:[#allocation4 + $0x118] sm:$0xff]
    %v1183 = vld [vmem:[#allocation4 + $0x120] sm:$0xff]
    %v1184 = vld [vmem:[#allocation4 + $0x128] sm:$0xff]
    %v1185 = vld [vmem:[#allocation4 + $0x130] sm:$0xff]
    %v1186 = vld [vmem:[#allocation4 + $0x138] sm:$0xff]
    %v1187 = vld [vmem:[#allocation4 + $0x140] sm:$0xff]
    %v1188 = vld [vmem:[#allocation4 + $0x148] sm:$0xff]
    %v1189 = vld [vmem:[#allocation4 + $0x150] sm:$0xff]
    %v1190 = vld [vmem:[#allocation4 + $0x158] sm:$0xff]
    %v1191 = vld [vmem:[#allocation4 + $0x160] sm:$0xff]
    %v1192 = vld [vmem:[#allocation4 + $0x168] sm:$0xff]
    %v1193 = vld [vmem:[#allocation4 + $0x170] sm:$0xff]
    %v1194 = vld [vmem:[#allocation4 + $0x178] sm:$0xff]
    %v1195 = vld [vmem:[#allocation4 + $0x180] sm:$0xff]
    %v1196 = vld [vmem:[#allocation4 + $0x188] sm:$0xff]
    %v1197 = vld [vmem:[#allocation4 + $0x190] sm:$0xff]
    %v1198 = vld [vmem:[#allocation4 + $0x198] sm:$0xff]
    %v1199 = vld [vmem:[#allocation4 + $0x1a0] sm:$0xff]
    %v1200 = vld [vmem:[#allocation4 + $0x1a8] sm:$0xff]
    %v1201 = vld [vmem:[#allocation4 + $0x1b0] sm:$0xff]
    %v1202 = vld [vmem:[#allocation4 + $0x1b8] sm:$0xff]
    %v1203 = vld [vmem:[#allocation4 + $0x1c0] sm:$0xff]
    %v1204 = vld [vmem:[#allocation4 + $0x1c8] sm:$0xff]
    %v1205 = vld [vmem:[#allocation4 + $0x1d0] sm:$0xff]
    %v1206 = vld [vmem:[#allocation4 + $0x1d8] sm:$0xff]
    %v1207 = vld [vmem:[#allocation4 + $0x1e0] sm:$0xff]
    %v1208 = vld [vmem:[#allocation4 + $0x1e8] sm:$0xff]
    %v1209 = vld [vmem:[#allocation4 + $0x1f0] sm:$0xff]
    %v1210 = vld [vmem:[#allocation4 + $0x1f8] sm:$0xff]
    %v1211 = vld [vmem:[#allocation4 + $0x200] sm:$0xff]
    %v1212 = vld [vmem:[#allocation4 + $0x208] sm:$0xff]
    %v1213 = vld [vmem:[#allocation4 + $0x210] sm:$0xff]
    %v1214 = vld [vmem:[#allocation4 + $0x218] sm:$0xff]
    %v1215 = vld [vmem:[#allocation4 + $0x220] sm:$0xff]
    %v1216 = vld [vmem:[#allocation4 + $0x228] sm:$0xff]
    %v1217 = vld [vmem:[#allocation4 + $0x230] sm:$0xff]
    %v1218 = vld [vmem:[#allocation4 + $0x238] sm:$0xff]
    %v1219 = vld [vmem:[#allocation4 + $0x240] sm:$0xff]
    %v1220 = vld [vmem:[#allocation4 + $0x248] sm:$0xff]
    %v1221 = vld [vmem:[#allocation4 + $0x250] sm:$0xff]
    %v1222 = vld [vmem:[#allocation4 + $0x258] sm:$0xff]
    %v1223 = vld [vmem:[#allocation4 + $0x260] sm:$0xff]
    %v1224 = vld [vmem:[#allocation4 + $0x268] sm:$0xff]
    %v1225 = vld [vmem:[#allocation4 + $0x270] sm:$0xff]
    %v1226 = vld [vmem:[#allocation4 + $0x278] sm:$0xff]
    %v1227 = vld [vmem:[#allocation4 + $0x280] sm:$0xff]
    %v1228 = vld [vmem:[#allocation4 + $0x288] sm:$0xff]
    %v1229 = vld [vmem:[#allocation4 + $0x290] sm:$0xff]
    %v1230 = vld [vmem:[#allocation4 + $0x298] sm:$0xff]
    %v1231 = vld [vmem:[#allocation4 + $0x2a0] sm:$0xff]
    %v1232 = vld [vmem:[#allocation4 + $0x2a8] sm:$0xff]
    %v1233 = vld [vmem:[#allocation4 + $0x2b0] sm:$0xff]
    %v1234 = vld [vmem:[#allocation4 + $0x2b8] sm:$0xff]
    %v1235 = vld [vmem:[#allocation4 + $0x2c0] sm:$0xff]
    %v1236 = vld [vmem:[#allocation4 + $0x2c8] sm:$0xff]
    %v1237 = vld [vmem:[#allocation4 + $0x2d0] sm:$0xff]
    %v1238 = vld [vmem:[#allocation4 + $0x2d8] sm:$0xff]
    %v1239 = vld [vmem:[#allocation4 + $0x2e0] sm:$0xff]
    %v1240 = vld [vmem:[#allocation4 + $0x2e8] sm:$0xff]
    %v1241 = vld [vmem:[#allocation4 + $0x2f0] sm:$0xff]
    %v1242 = vld [vmem:[#allocation4 + $0x2f8] sm:$0xff]
    %v1243 = vld [vmem:[#allocation4 + $0x300] sm:$0xff]
    %v1244 = vld [vmem:[#allocation4 + $0x308] sm:$0xff]
    %v1245 = vld [vmem:[#allocation4 + $0x310] sm:$0xff]
    %v1246 = vld [vmem:[#allocation4 + $0x318] sm:$0xff]
    %v1247 = vld [vmem:[#allocation4 + $0x320] sm:$0xff]
    %v1248 = vld [vmem:[#allocation4 + $0x328] sm:$0xff]
    %v1249 = vld [vmem:[#allocation4 + $0x330] sm:$0xff]
    %v1250 = vld [vmem:[#allocation4 + $0x338] sm:$0xff]
    %v1251 = vld [vmem:[#allocation4 + $0x340] sm:$0xff]
    %v1252 = vld [vmem:[#allocation4 + $0x348] sm:$0xff]
    %v1253 = vld [vmem:[#allocation4 + $0x350] sm:$0xff]
    %v1254 = vld [vmem:[#allocation4 + $0x358] sm:$0xff]
    %v1255 = vld [vmem:[#allocation4 + $0x360] sm:$0xff]
    %v1256 = vld [vmem:[#allocation4 + $0x368] sm:$0xff]
    %v1257 = vld [vmem:[#allocation4 + $0x370] sm:$0xff]
    %v1258 = vld [vmem:[#allocation4 + $0x378] sm:$0xff]
    %v1259 = vld [vmem:[#allocation4 + $0x380] sm:$0xff]
    %v1260 = vld [vmem:[#allocation4 + $0x388] sm:$0xff]
    %v1261 = vld [vmem:[#allocation4 + $0x390] sm:$0xff]
    %v1262 = vld [vmem:[#allocation4 + $0x398] sm:$0xff]
    %v1263 = vld [vmem:[#allocation4 + $0x3a0] sm:$0xff]
    %v1264 = vld [vmem:[#allocation4 + $0x3a8] sm:$0xff]
    %v1265 = vld [vmem:[#allocation4 + $0x3b0] sm:$0xff]
    %v1266 = vld [vmem:[#allocation4 + $0x3b8] sm:$0xff]
    %v1267 = vld [vmem:[#allocation4 + $0x3c0] sm:$0xff]
    %v1268 = vld [vmem:[#allocation4 + $0x3c8] sm:$0xff]
    %v1269 = vld [vmem:[#allocation4 + $0x3d0] sm:$0xff]
    %v1270 = vld [vmem:[#allocation4 + $0x3d8] sm:$0xff]
    %v1271 = vld [vmem:[#allocation4 + $0x3e0] sm:$0xff]
    %v1272 = vld [vmem:[#allocation4 + $0x3e8] sm:$0xff]
    %v1273 = vld [vmem:[#allocation4 + $0x3f0] sm:$0xff]
    %v1274 = vld [vmem:[#allocation4 + $0x3f8] sm:$0xff]
    %v1275 = vld [vmem:[%s7] sm:$0xf]
    %v1277 = vlaneseq
    %v1278 = vshrl.u32 %v1277, 7
    %v1279 = vsub.s32 0, %v1278
    %v1280 = vrot.slane %v1275, %v1279
    %v1281 = vlaneseq
    %v1282 = vshrl.u32 %v1281, 7
    %v1283 = vsub.s32 1, %v1282
    %v1284 = vrot.slane %v1275, %v1283
    %v1285 = vlaneseq
    %v1286 = vshrl.u32 %v1285, 7
    %v1287 = vsub.s32 2, %v1286
    %v1288 = vrot.slane %v1275, %v1287
    %v1289 = vlaneseq
    %v1290 = vshrl.u32 %v1289, 7
    %v1291 = vsub.s32 3, %v1290
    %v1292 = vrot.slane %v1275, %v1291
    %v1425 = vunpack.c.l.b16 %v1147
    %v1426 = vunpack.c.h.b16 %v1147
    %v1427 = vunpack.c.l.b16 %v1148
    %v1428 = vunpack.c.h.b16 %v1148
    %v1429 = vunpack.c.l.b16 %v1149
    %v1430 = vunpack.c.h.b16 %v1149
    %v1431 = vunpack.c.l.b16 %v1150
    %v1432 = vunpack.c.h.b16 %v1150
    %v1433 = vunpack.c.l.b16 %v1151
    %v1434 = vunpack.c.h.b16 %v1151
    %v1435 = vunpack.c.l.b16 %v1152
    %v1436 = vunpack.c.h.b16 %v1152
    %v1437 = vunpack.c.l.b16 %v1153
    %v1438 = vunpack.c.h.b16 %v1153
    %v1439 = vunpack.c.l.b16 %v1154
    %v1440 = vunpack.c.h.b16 %v1154
    %v1441 = vunpack.c.l.b16 %v1155
    %v1442 = vunpack.c.h.b16 %v1155
    %v1443 = vunpack.c.l.b16 %v1156
    %v1444 = vunpack.c.h.b16 %v1156
    %v1445 = vunpack.c.l.b16 %v1157
    %v1446 = vunpack.c.h.b16 %v1157
    %v1447 = vunpack.c.l.b16 %v1158
    %v1448 = vunpack.c.h.b16 %v1158
    %v1449 = vunpack.c.l.b16 %v1159
    %v1450 = vunpack.c.h.b16 %v1159
    %v1451 = vunpack.c.l.b16 %v1160
    %v1452 = vunpack.c.h.b16 %v1160
    %v1453 = vunpack.c.l.b16 %v1161
    %v1454 = vunpack.c.h.b16 %v1161
    %v1455 = vunpack.c.l.b16 %v1162
    %v1456 = vunpack.c.h.b16 %v1162
    %v1457 = vunpack.c.l.b16 %v1163
    %v1458 = vunpack.c.h.b16 %v1163
    %v1459 = vunpack.c.l.b16 %v1164
    %v1460 = vunpack.c.h.b16 %v1164
    %v1461 = vunpack.c.l.b16 %v1165
    %v1462 = vunpack.c.h.b16 %v1165
    %v1463 = vunpack.c.l.b16 %v1166
    %v1464 = vunpack.c.h.b16 %v1166
    %v1465 = vunpack.c.l.b16 %v1167
    %v1466 = vunpack.c.h.b16 %v1167
    %v1467 = vunpack.c.l.b16 %v1168
    %v1468 = vunpack.c.h.b16 %v1168
    %v1469 = vunpack.c.l.b16 %v1169
    %v1470 = vunpack.c.h.b16 %v1169
    %v1471 = vunpack.c.l.b16 %v1170
    %v1472 = vunpack.c.h.b16 %v1170
    %v1473 = vunpack.c.l.b16 %v1171
    %v1474 = vunpack.c.h.b16 %v1171
    %v1475 = vunpack.c.l.b16 %v1172
    %v1476 = vunpack.c.h.b16 %v1172
    %v1477 = vunpack.c.l.b16 %v1173
    %v1478 = vunpack.c.h.b16 %v1173
    %v1479 = vunpack.c.l.b16 %v1174
    %v1480 = vunpack.c.h.b16 %v1174
    %v1481 = vunpack.c.l.b16 %v1175
    %v1482 = vunpack.c.h.b16 %v1175
    %v1483 = vunpack.c.l.b16 %v1176
    %v1484 = vunpack.c.h.b16 %v1176
    %v1485 = vunpack.c.l.b16 %v1177
    %v1486 = vunpack.c.h.b16 %v1177
    %v1487 = vunpack.c.l.b16 %v1178
    %v1488 = vunpack.c.h.b16 %v1178
    %v1489 = vunpack.c.l.b16 %v1179
    %v1490 = vunpack.c.h.b16 %v1179
    %v1491 = vunpack.c.l.b16 %v1180
    %v1492 = vunpack.c.h.b16 %v1180
    %v1493 = vunpack.c.l.b16 %v1181
    %v1494 = vunpack.c.h.b16 %v1181
    %v1495 = vunpack.c.l.b16 %v1182
    %v1496 = vunpack.c.h.b16 %v1182
    %v1497 = vunpack.c.l.b16 %v1183
    %v1498 = vunpack.c.h.b16 %v1183
    %v1499 = vunpack.c.l.b16 %v1184
    %v1500 = vunpack.c.h.b16 %v1184
    %v1501 = vunpack.c.l.b16 %v1185
    %v1502 = vunpack.c.h.b16 %v1185
    %v1503 = vunpack.c.l.b16 %v1186
    %v1504 = vunpack.c.h.b16 %v1186
    %v1505 = vunpack.c.l.b16 %v1187
    %v1506 = vunpack.c.h.b16 %v1187
    %v1507 = vunpack.c.l.b16 %v1188
    %v1508 = vunpack.c.h.b16 %v1188
    %v1509 = vunpack.c.l.b16 %v1189
    %v1510 = vunpack.c.h.b16 %v1189
    %v1511 = vunpack.c.l.b16 %v1190
    %v1512 = vunpack.c.h.b16 %v1190
    %v1513 = vunpack.c.l.b16 %v1191
    %v1514 = vunpack.c.h.b16 %v1191
    %v1515 = vunpack.c.l.b16 %v1192
    %v1516 = vunpack.c.h.b16 %v1192
    %v1517 = vunpack.c.l.b16 %v1193
    %v1518 = vunpack.c.h.b16 %v1193
    %v1519 = vunpack.c.l.b16 %v1194
    %v1520 = vunpack.c.h.b16 %v1194
    %v1521 = vunpack.c.l.b16 %v1195
    %v1522 = vunpack.c.h.b16 %v1195
    %v1523 = vunpack.c.l.b16 %v1196
    %v1524 = vunpack.c.h.b16 %v1196
    %v1525 = vunpack.c.l.b16 %v1197
    %v1526 = vunpack.c.h.b16 %v1197
    %v1527 = vunpack.c.l.b16 %v1198
    %v1528 = vunpack.c.h.b16 %v1198
    %v1529 = vunpack.c.l.b16 %v1199
    %v1530 = vunpack.c.h.b16 %v1199
    %v1531 = vunpack.c.l.b16 %v1200
    %v1532 = vunpack.c.h.b16 %v1200
    %v1533 = vunpack.c.l.b16 %v1201
    %v1534 = vunpack.c.h.b16 %v1201
    %v1535 = vunpack.c.l.b16 %v1202
    %v1536 = vunpack.c.h.b16 %v1202
    %v1537 = vunpack.c.l.b16 %v1203
    %v1538 = vunpack.c.h.b16 %v1203
    %v1539 = vunpack.c.l.b16 %v1204
    %v1540 = vunpack.c.h.b16 %v1204
    %v1541 = vunpack.c.l.b16 %v1205
    %v1542 = vunpack.c.h.b16 %v1205
    %v1543 = vunpack.c.l.b16 %v1206
    %v1544 = vunpack.c.h.b16 %v1206
    %v1545 = vunpack.c.l.b16 %v1207
    %v1546 = vunpack.c.h.b16 %v1207
    %v1547 = vunpack.c.l.b16 %v1208
    %v1548 = vunpack.c.h.b16 %v1208
    %v1549 = vunpack.c.l.b16 %v1209
    %v1550 = vunpack.c.h.b16 %v1209
    %v1551 = vunpack.c.l.b16 %v1210
    %v1552 = vunpack.c.h.b16 %v1210
    %v1553 = vunpack.c.l.b16 %v1211
    %v1554 = vunpack.c.h.b16 %v1211
    %v1555 = vunpack.c.l.b16 %v1212
    %v1556 = vunpack.c.h.b16 %v1212
    %v1557 = vunpack.c.l.b16 %v1213
    %v1558 = vunpack.c.h.b16 %v1213
    %v1559 = vunpack.c.l.b16 %v1214
    %v1560 = vunpack.c.h.b16 %v1214
    %v1561 = vunpack.c.l.b16 %v1215
    %v1562 = vunpack.c.h.b16 %v1215
    %v1563 = vunpack.c.l.b16 %v1216
    %v1564 = vunpack.c.h.b16 %v1216
    %v1565 = vunpack.c.l.b16 %v1217
    %v1566 = vunpack.c.h.b16 %v1217
    %v1567 = vunpack.c.l.b16 %v1218
    %v1568 = vunpack.c.h.b16 %v1218
    %v1569 = vunpack.c.l.b16 %v1219
    %v1570 = vunpack.c.h.b16 %v1219
    %v1571 = vunpack.c.l.b16 %v1220
    %v1572 = vunpack.c.h.b16 %v1220
    %v1573 = vunpack.c.l.b16 %v1221
    %v1574 = vunpack.c.h.b16 %v1221
    %v1575 = vunpack.c.l.b16 %v1222
    %v1576 = vunpack.c.h.b16 %v1222
    %v1577 = vunpack.c.l.b16 %v1223
    %v1578 = vunpack.c.h.b16 %v1223
    %v1579 = vunpack.c.l.b16 %v1224
    %v1580 = vunpack.c.h.b16 %v1224
    %v1581 = vunpack.c.l.b16 %v1225
    %v1582 = vunpack.c.h.b16 %v1225
    %v1583 = vunpack.c.l.b16 %v1226
    %v1584 = vunpack.c.h.b16 %v1226
    %v1585 = vunpack.c.l.b16 %v1227
    %v1586 = vunpack.c.h.b16 %v1227
    %v1587 = vunpack.c.l.b16 %v1228
    %v1588 = vunpack.c.h.b16 %v1228
    %v1589 = vunpack.c.l.b16 %v1229
    %v1590 = vunpack.c.h.b16 %v1229
    %v1591 = vunpack.c.l.b16 %v1230
    %v1592 = vunpack.c.h.b16 %v1230
    %v1593 = vunpack.c.l.b16 %v1231
    %v1594 = vunpack.c.h.b16 %v1231
    %v1595 = vunpack.c.l.b16 %v1232
    %v1596 = vunpack.c.h.b16 %v1232
    %v1597 = vunpack.c.l.b16 %v1233
    %v1598 = vunpack.c.h.b16 %v1233
    %v1599 = vunpack.c.l.b16 %v1234
    %v1600 = vunpack.c.h.b16 %v1234
    %v1601 = vunpack.c.l.b16 %v1235
    %v1602 = vunpack.c.h.b16 %v1235
    %v1603 = vunpack.c.l.b16 %v1236
    %v1604 = vunpack.c.h.b16 %v1236
    %v1605 = vunpack.c.l.b16 %v1237
    %v1606 = vunpack.c.h.b16 %v1237
    %v1607 = vunpack.c.l.b16 %v1238
    %v1608 = vunpack.c.h.b16 %v1238
    %v1609 = vunpack.c.l.b16 %v1239
    %v1610 = vunpack.c.h.b16 %v1239
    %v1611 = vunpack.c.l.b16 %v1240
    %v1612 = vunpack.c.h.b16 %v1240
    %v1613 = vunpack.c.l.b16 %v1241
    %v1614 = vunpack.c.h.b16 %v1241
    %v1615 = vunpack.c.l.b16 %v1242
    %v1616 = vunpack.c.h.b16 %v1242
    %v1617 = vunpack.c.l.b16 %v1243
    %v1618 = vunpack.c.h.b16 %v1243
    %v1619 = vunpack.c.l.b16 %v1244
    %v1620 = vunpack.c.h.b16 %v1244
    %v1621 = vunpack.c.l.b16 %v1245
    %v1622 = vunpack.c.h.b16 %v1245
    %v1623 = vunpack.c.l.b16 %v1246
    %v1624 = vunpack.c.h.b16 %v1246
    %v1625 = vunpack.c.l.b16 %v1247
    %v1626 = vunpack.c.h.b16 %v1247
    %v1627 = vunpack.c.l.b16 %v1248
    %v1628 = vunpack.c.h.b16 %v1248
    %v1629 = vunpack.c.l.b16 %v1249
    %v1630 = vunpack.c.h.b16 %v1249
    %v1631 = vunpack.c.l.b16 %v1250
    %v1632 = vunpack.c.h.b16 %v1250
    %v1633 = vunpack.c.l.b16 %v1251
    %v1634 = vunpack.c.h.b16 %v1251
    %v1635 = vunpack.c.l.b16 %v1252
    %v1636 = vunpack.c.h.b16 %v1252
    %v1637 = vunpack.c.l.b16 %v1253
    %v1638 = vunpack.c.h.b16 %v1253
    %v1639 = vunpack.c.l.b16 %v1254
    %v1640 = vunpack.c.h.b16 %v1254
    %v1641 = vunpack.c.l.b16 %v1255
    %v1642 = vunpack.c.h.b16 %v1255
    %v1643 = vunpack.c.l.b16 %v1256
    %v1644 = vunpack.c.h.b16 %v1256
    %v1645 = vunpack.c.l.b16 %v1257
    %v1646 = vunpack.c.h.b16 %v1257
    %v1647 = vunpack.c.l.b16 %v1258
    %v1648 = vunpack.c.h.b16 %v1258
    %v1649 = vunpack.c.l.b16 %v1259
    %v1650 = vunpack.c.h.b16 %v1259
    %v1651 = vunpack.c.l.b16 %v1260
    %v1652 = vunpack.c.h.b16 %v1260
    %v1653 = vunpack.c.l.b16 %v1261
    %v1654 = vunpack.c.h.b16 %v1261
    %v1655 = vunpack.c.l.b16 %v1262
    %v1656 = vunpack.c.h.b16 %v1262
    %v1657 = vunpack.c.l.b16 %v1263
    %v1658 = vunpack.c.h.b16 %v1263
    %v1659 = vunpack.c.l.b16 %v1264
    %v1660 = vunpack.c.h.b16 %v1264
    %v1661 = vunpack.c.l.b16 %v1265
    %v1662 = vunpack.c.h.b16 %v1265
    %v1663 = vunpack.c.l.b16 %v1266
    %v1664 = vunpack.c.h.b16 %v1266
    %v1665 = vunpack.c.l.b16 %v1267
    %v1666 = vunpack.c.h.b16 %v1267
    %v1667 = vunpack.c.l.b16 %v1268
    %v1668 = vunpack.c.h.b16 %v1268
    %v1669 = vunpack.c.l.b16 %v1269
    %v1670 = vunpack.c.h.b16 %v1269
    %v1671 = vunpack.c.l.b16 %v1270
    %v1672 = vunpack.c.h.b16 %v1270
    %v1673 = vunpack.c.l.b16 %v1271
    %v1674 = vunpack.c.h.b16 %v1271
    %v1675 = vunpack.c.l.b16 %v1272
    %v1676 = vunpack.c.h.b16 %v1272
    %v1677 = vunpack.c.l.b16 %v1273
    %v1678 = vunpack.c.h.b16 %v1273
    %v1679 = vunpack.c.l.b16 %v1274
    %v1680 = vunpack.c.h.b16 %v1274
    %v1681 = vpack.c.b16 %v1429, %v1425
    %v1682 = vpack.c.b16 %v1430, %v1426
    %v1683 = vpack.c.b16 %v1431, %v1427
    %v1684 = vpack.c.b16 %v1432, %v1428
    %v1685 = vpack.c.b16 %v1437, %v1433
    %v1686 = vpack.c.b16 %v1438, %v1434
    %v1687 = vpack.c.b16 %v1439, %v1435
    %v1688 = vpack.c.b16 %v1440, %v1436
    %v1689 = vpack.c.b16 %v1445, %v1441
    %v1690 = vpack.c.b16 %v1446, %v1442
    %v1691 = vpack.c.b16 %v1447, %v1443
    %v1692 = vpack.c.b16 %v1448, %v1444
    %v1693 = vpack.c.b16 %v1453, %v1449
    %v1694 = vpack.c.b16 %v1454, %v1450
    %v1695 = vpack.c.b16 %v1455, %v1451
    %v1696 = vpack.c.b16 %v1456, %v1452
    %v1697 = vpack.c.b16 %v1461, %v1457
    %v1698 = vpack.c.b16 %v1462, %v1458
    %v1699 = vpack.c.b16 %v1463, %v1459
    %v1700 = vpack.c.b16 %v1464, %v1460
    %v1701 = vpack.c.b16 %v1469, %v1465
    %v1702 = vpack.c.b16 %v1470, %v1466
    %v1703 = vpack.c.b16 %v1471, %v1467
    %v1704 = vpack.c.b16 %v1472, %v1468
    %v1705 = vpack.c.b16 %v1477, %v1473
    %v1706 = vpack.c.b16 %v1478, %v1474
    %v1707 = vpack.c.b16 %v1479, %v1475
    %v1708 = vpack.c.b16 %v1480, %v1476
    %v1709 = vpack.c.b16 %v1485, %v1481
    %v1710 = vpack.c.b16 %v1486, %v1482
    %v1711 = vpack.c.b16 %v1487, %v1483
    %v1712 = vpack.c.b16 %v1488, %v1484
    %v1713 = vpack.c.b16 %v1493, %v1489
    %v1714 = vpack.c.b16 %v1494, %v1490
    %v1715 = vpack.c.b16 %v1495, %v1491
    %v1716 = vpack.c.b16 %v1496, %v1492
    %v1717 = vpack.c.b16 %v1501, %v1497
    %v1718 = vpack.c.b16 %v1502, %v1498
    %v1719 = vpack.c.b16 %v1503, %v1499
    %v1720 = vpack.c.b16 %v1504, %v1500
    %v1721 = vpack.c.b16 %v1509, %v1505
    %v1722 = vpack.c.b16 %v1510, %v1506
    %v1723 = vpack.c.b16 %v1511, %v1507
    %v1724 = vpack.c.b16 %v1512, %v1508
    %v1725 = vpack.c.b16 %v1517, %v1513
    %v1726 = vpack.c.b16 %v1518, %v1514
    %v1727 = vpack.c.b16 %v1519, %v1515
    %v1728 = vpack.c.b16 %v1520, %v1516
    %v1729 = vpack.c.b16 %v1525, %v1521
    %v1730 = vpack.c.b16 %v1526, %v1522
    %v1731 = vpack.c.b16 %v1527, %v1523
    %v1732 = vpack.c.b16 %v1528, %v1524
    %v1733 = vpack.c.b16 %v1533, %v1529
    %v1734 = vpack.c.b16 %v1534, %v1530
    %v1735 = vpack.c.b16 %v1535, %v1531
    %v1736 = vpack.c.b16 %v1536, %v1532
    %v1737 = vpack.c.b16 %v1541, %v1537
    %v1738 = vpack.c.b16 %v1542, %v1538
    %v1739 = vpack.c.b16 %v1543, %v1539
    %v1740 = vpack.c.b16 %v1544, %v1540
    %v1741 = vpack.c.b16 %v1549, %v1545
    %v1742 = vpack.c.b16 %v1550, %v1546
    %v1743 = vpack.c.b16 %v1551, %v1547
    %v1744 = vpack.c.b16 %v1552, %v1548
    %v1745 = vpack.c.b16 %v1557, %v1553
    %v1746 = vpack.c.b16 %v1558, %v1554
    %v1747 = vpack.c.b16 %v1559, %v1555
    %v1748 = vpack.c.b16 %v1560, %v1556
    %v1749 = vpack.c.b16 %v1565, %v1561
    %v1750 = vpack.c.b16 %v1566, %v1562
    %v1751 = vpack.c.b16 %v1567, %v1563
    %v1752 = vpack.c.b16 %v1568, %v1564
    %v1753 = vpack.c.b16 %v1573, %v1569
    %v1754 = vpack.c.b16 %v1574, %v1570
    %v1755 = vpack.c.b16 %v1575, %v1571
    %v1756 = vpack.c.b16 %v1576, %v1572
    %v1757 = vpack.c.b16 %v1581, %v1577
    %v1758 = vpack.c.b16 %v1582, %v1578
    %v1759 = vpack.c.b16 %v1583, %v1579
    %v1760 = vpack.c.b16 %v1584, %v1580
    %v1761 = vpack.c.b16 %v1589, %v1585
    %v1762 = vpack.c.b16 %v1590, %v1586
    %v1763 = vpack.c.b16 %v1591, %v1587
    %v1764 = vpack.c.b16 %v1592, %v1588
    %v1765 = vpack.c.b16 %v1597, %v1593
    %v1766 = vpack.c.b16 %v1598, %v1594
    %v1767 = vpack.c.b16 %v1599, %v1595
    %v1768 = vpack.c.b16 %v1600, %v1596
    %v1769 = vpack.c.b16 %v1605, %v1601
    %v1770 = vpack.c.b16 %v1606, %v1602
    %v1771 = vpack.c.b16 %v1607, %v1603
    %v1772 = vpack.c.b16 %v1608, %v1604
    %v1773 = vpack.c.b16 %v1613, %v1609
    %v1774 = vpack.c.b16 %v1614, %v1610
    %v1775 = vpack.c.b16 %v1615, %v1611
    %v1776 = vpack.c.b16 %v1616, %v1612
    %v1777 = vpack.c.b16 %v1621, %v1617
    %v1778 = vpack.c.b16 %v1622, %v1618
    %v1779 = vpack.c.b16 %v1623, %v1619
    %v1780 = vpack.c.b16 %v1624, %v1620
    %v1781 = vpack.c.b16 %v1629, %v1625
    %v1782 = vpack.c.b16 %v1630, %v1626
    %v1783 = vpack.c.b16 %v1631, %v1627
    %v1784 = vpack.c.b16 %v1632, %v1628
    %v1785 = vpack.c.b16 %v1637, %v1633
    %v1786 = vpack.c.b16 %v1638, %v1634
    %v1787 = vpack.c.b16 %v1639, %v1635
    %v1788 = vpack.c.b16 %v1640, %v1636
    %v1789 = vpack.c.b16 %v1645, %v1641
    %v1790 = vpack.c.b16 %v1646, %v1642
    %v1791 = vpack.c.b16 %v1647, %v1643
    %v1792 = vpack.c.b16 %v1648, %v1644
    %v1793 = vpack.c.b16 %v1653, %v1649
    %v1794 = vpack.c.b16 %v1654, %v1650
    %v1795 = vpack.c.b16 %v1655, %v1651
    %v1796 = vpack.c.b16 %v1656, %v1652
    %v1797 = vpack.c.b16 %v1661, %v1657
    %v1798 = vpack.c.b16 %v1662, %v1658
    %v1799 = vpack.c.b16 %v1663, %v1659
    %v1800 = vpack.c.b16 %v1664, %v1660
    %v1801 = vpack.c.b16 %v1669, %v1665
    %v1802 = vpack.c.b16 %v1670, %v1666
    %v1803 = vpack.c.b16 %v1671, %v1667
    %v1804 = vpack.c.b16 %v1672, %v1668
    %v1805 = vpack.c.b16 %v1677, %v1673
    %v1806 = vpack.c.b16 %v1678, %v1674
    %v1807 = vpack.c.b16 %v1679, %v1675
    %v1808 = vpack.c.b16 %v1680, %v1676
    %1937 = vmatprep.subr.bf16.mxu0 %v1682
    %1938 = vmatpush1.bf16.msra.mxu0 %v1681
    %1939 = vmatprep.subr.bf16.mxu0 %v1686
    %1940 = vmatpush1.bf16.msra.mxu0 %v1685
    %1941 = vmatprep.subr.bf16.mxu0 %v1690
    %1942 = vmatpush1.bf16.msra.mxu0 %v1689
    %1943 = vmatprep.subr.bf16.mxu0 %v1694
    %1944 = vmatpush1.bf16.msra.mxu0 %v1693
    %1945 = vmatprep.subr.bf16.mxu0 %v1698
    %1946 = vmatpush1.bf16.msra.mxu0 %v1697
    %1947 = vmatprep.subr.bf16.mxu0 %v1702
    %1948 = vmatpush1.bf16.msra.mxu0 %v1701
    %1949 = vmatprep.subr.bf16.mxu0 %v1706
    %1950 = vmatpush1.bf16.msra.mxu0 %v1705
    %1951 = vmatprep.subr.bf16.mxu0 %v1710
    %1952 = vmatpush1.bf16.msra.mxu0 %v1709
    %1953 = vmatprep.subr.bf16.mxu0 %v1714
    %1954 = vmatpush1.bf16.msra.mxu0 %v1713
    %1955 = vmatprep.subr.bf16.mxu0 %v1718
    %1956 = vmatpush1.bf16.msra.mxu0 %v1717
    %1957 = vmatprep.subr.bf16.mxu0 %v1722
    %1958 = vmatpush1.bf16.msra.mxu0 %v1721
    %1959 = vmatprep.subr.bf16.mxu0 %v1726
    %1960 = vmatpush1.bf16.msra.mxu0 %v1725
    %1961 = vmatprep.subr.bf16.mxu0 %v1730
    %1962 = vmatpush1.bf16.msra.mxu0 %v1729
    %1963 = vmatprep.subr.bf16.mxu0 %v1734
    %1964 = vmatpush1.bf16.msra.mxu0 %v1733
    %1965 = vmatprep.subr.bf16.mxu0 %v1738
    %1966 = vmatpush1.bf16.msra.mxu0 %v1737
    %1967 = vmatprep.subr.bf16.mxu0 %v1742
    %1968 = vmatpush1.bf16.msra.mxu0 %v1741
    %1969 = vmatprep.mubr.bf16.mxu0 %v1144
    %1970 = vmatmul.mubr.bf16.gmra.mrb[0].mxu0 %v1143
    %v1971 = vpop.f32.mrb[0].mxu0
    %v1972 = vadd.f32 %v1280, %v1971
    %v1973 = vpop.f32.mrb[0].mxu0
    %v1974 = vadd.f32 %v1284, %v1973
    %v1975 = vpop.f32.mrb[0].mxu0
    %v1976 = vpop.f32.mrb[0].mxu0
    %1977 = vdwg.mxu0
    %1978 = vmatprep.subr.bf16.mxu0 %v1746
    %1979 = vmatpush1.bf16.msra.mxu0 %v1745
    %1980 = vmatprep.subr.bf16.mxu0 %v1750
    %1981 = vmatpush1.bf16.msra.mxu0 %v1749
    %1982 = vmatprep.subr.bf16.mxu0 %v1754
    %1983 = vmatpush1.bf16.msra.mxu0 %v1753
    %1984 = vmatprep.subr.bf16.mxu0 %v1758
    %1985 = vmatpush1.bf16.msra.mxu0 %v1757
    %1986 = vmatprep.subr.bf16.mxu0 %v1762
    %1987 = vmatpush1.bf16.msra.mxu0 %v1761
    %1988 = vmatprep.subr.bf16.mxu0 %v1766
    %1989 = vmatpush1.bf16.msra.mxu0 %v1765
    %1990 = vmatprep.subr.bf16.mxu0 %v1770
    %1991 = vmatpush1.bf16.msra.mxu0 %v1769
    %1992 = vmatprep.subr.bf16.mxu0 %v1774
    %1993 = vmatpush1.bf16.msra.mxu0 %v1773
    %1994 = vmatprep.subr.bf16.mxu0 %v1778
    %1995 = vmatpush1.bf16.msra.mxu0 %v1777
    %1996 = vmatprep.subr.bf16.mxu0 %v1782
    %1997 = vmatpush1.bf16.msra.mxu0 %v1781
    %1998 = vmatprep.subr.bf16.mxu0 %v1786
    %1999 = vmatpush1.bf16.msra.mxu0 %v1785
    %2000 = vmatprep.subr.bf16.mxu0 %v1790
    %2001 = vmatpush1.bf16.msra.mxu0 %v1789
    %2002 = vmatprep.subr.bf16.mxu0 %v1794
    %2003 = vmatpush1.bf16.msra.mxu0 %v1793
    %2004 = vmatprep.subr.bf16.mxu0 %v1798
    %2005 = vmatpush1.bf16.msra.mxu0 %v1797
    %2006 = vmatprep.subr.bf16.mxu0 %v1802
    %2007 = vmatpush1.bf16.msra.mxu0 %v1801
    %2008 = vmatprep.subr.bf16.mxu0 %v1806
    %2009 = vmatpush1.bf16.msra.mxu0 %v1805
    %2010 = vmatprep.mubr.bf16.mxu0 %v1146
    %2011 = vmatmul.mubr.bf16.gmra.mrb[0].mxu0 %v1145
    %v2012 = vpop.f32.mrb[0].mxu0
    %v2013 = vadd.f32 %v1972, %v2012
    %v2014 = vpop.f32.mrb[0].mxu0
    %v2015 = vadd.f32 %v1974, %v2014
    %v2016 = vpop.f32.mrb[0].mxu0
    %v2017 = vpop.f32.mrb[0].mxu0
    %2018 = vdwg.mxu0
    %2019 = vmatprep.subr.bf16.mxu0 %v1684
    %2020 = vmatpush1.bf16.msra.mxu0 %v1683
    %2021 = vmatprep.subr.bf16.mxu0 %v1688
    %2022 = vmatpush1.bf16.msra.mxu0 %v1687
    %2023 = vmatprep.subr.bf16.mxu0 %v1692
    %2024 = vmatpush1.bf16.msra.mxu0 %v1691
    %2025 = vmatprep.subr.bf16.mxu0 %v1696
    %2026 = vmatpush1.bf16.msra.mxu0 %v1695
    %2027 = vmatprep.subr.bf16.mxu0 %v1700
    %2028 = vmatpush1.bf16.msra.mxu0 %v1699
    %2029 = vmatprep.subr.bf16.mxu0 %v1704
    %2030 = vmatpush1.bf16.msra.mxu0 %v1703
    %2031 = vmatprep.subr.bf16.mxu0 %v1708
    %2032 = vmatpush1.bf16.msra.mxu0 %v1707
    %2033 = vmatprep.subr.bf16.mxu0 %v1712
    %2034 = vmatpush1.bf16.msra.mxu0 %v1711
    %2035 = vmatprep.subr.bf16.mxu0 %v1716
    %2036 = vmatpush1.bf16.msra.mxu0 %v1715
    %2037 = vmatprep.subr.bf16.mxu0 %v1720
    %2038 = vmatpush1.bf16.msra.mxu0 %v1719
    %2039 = vmatprep.subr.bf16.mxu0 %v1724
    %2040 = vmatpush1.bf16.msra.mxu0 %v1723
    %2041 = vmatprep.subr.bf16.mxu0 %v1728
    %2042 = vmatpush1.bf16.msra.mxu0 %v1727
    %2043 = vmatprep.subr.bf16.mxu0 %v1732
    %2044 = vmatpush1.bf16.msra.mxu0 %v1731
    %2045 = vmatprep.subr.bf16.mxu0 %v1736
    %2046 = vmatpush1.bf16.msra.mxu0 %v1735
    %2047 = vmatprep.subr.bf16.mxu0 %v1740
    %2048 = vmatpush1.bf16.msra.mxu0 %v1739
    %2049 = vmatprep.subr.bf16.mxu0 %v1744
    %2050 = vmatpush1.bf16.msra.mxu0 %v1743
    %2051 = vmatprep.mubr.bf16.mxu0 %v1144
    %2052 = vmatmul.mubr.bf16.gmra.mrb[0].mxu0 %v1143
    %v2053 = vpop.f32.mrb[0].mxu0
    %v2054 = vadd.f32 %v1288, %v2053
    %v2055 = vpop.f32.mrb[0].mxu0
    %v2056 = vadd.f32 %v1292, %v2055
    %v2057 = vpop.f32.mrb[0].mxu0
    %v2058 = vpop.f32.mrb[0].mxu0
    %2059 = vdwg.mxu0
    %2060 = vmatprep.subr.bf16.mxu0 %v1748
    %2061 = vmatpush1.bf16.msra.mxu0 %v1747
    %2062 = vmatprep.subr.bf16.mxu0 %v1752
    %2063 = vmatpush1.bf16.msra.mxu0 %v1751
    %2064 = vmatprep.subr.bf16.mxu0 %v1756
    %2065 = vmatpush1.bf16.msra.mxu0 %v1755
    %2066 = vmatprep.subr.bf16.mxu0 %v1760
    %2067 = vmatpush1.bf16.msra.mxu0 %v1759
    %2068 = vmatprep.subr.bf16.mxu0 %v1764
    %2069 = vmatpush1.bf16.msra.mxu0 %v1763
    %2070 = vmatprep.subr.bf16.mxu0 %v1768
    %2071 = vmatpush1.bf16.msra.mxu0 %v1767
    %2072 = vmatprep.subr.bf16.mxu0 %v1772
    %2073 = vmatpush1.bf16.msra.mxu0 %v1771
    %2074 = vmatprep.subr.bf16.mxu0 %v1776
    %2075 = vmatpush1.bf16.msra.mxu0 %v1775
    %2076 = vmatprep.subr.bf16.mxu0 %v1780
    %2077 = vmatpush1.bf16.msra.mxu0 %v1779
    %2078 = vmatprep.subr.bf16.mxu0 %v1784
    %2079 = vmatpush1.bf16.msra.mxu0 %v1783
    %2080 = vmatprep.subr.bf16.mxu0 %v1788
    %2081 = vmatpush1.bf16.msra.mxu0 %v1787
    %2082 = vmatprep.subr.bf16.mxu0 %v1792
    %2083 = vmatpush1.bf16.msra.mxu0 %v1791
    %2084 = vmatprep.subr.bf16.mxu0 %v1796
    %2085 = vmatpush1.bf16.msra.mxu0 %v1795
    %2086 = vmatprep.subr.bf16.mxu0 %v1800
    %2087 = vmatpush1.bf16.msra.mxu0 %v1799
    %2088 = vmatprep.subr.bf16.mxu0 %v1804
    %2089 = vmatpush1.bf16.msra.mxu0 %v1803
    %2090 = vmatprep.subr.bf16.mxu0 %v1808
    %2091 = vmatpush1.bf16.msra.mxu0 %v1807
    %2092 = vmatprep.mubr.bf16.mxu0 %v1146
    %2093 = vmatmul.mubr.bf16.gmra.mrb[0].mxu0 %v1145
    %v2094 = vpop.f32.mrb[0].mxu0
    %v2095 = vadd.f32 %v2054, %v2094
    %v2096 = vpop.f32.mrb[0].mxu0
    %v2097 = vadd.f32 %v2056, %v2096
    %v2098 = vpop.f32.mrb[0].mxu0
    %v2099 = vpop.f32.mrb[0].mxu0
    %2100 = vdwg.mxu0
    %v2101 = vmax.f32 %v2013, 0.0
    %v2102 = vmax.f32 %v2015, 0.0
    %v2103 = vmax.f32 %v2095, 0.0
    %v2104 = vmax.f32 %v2097, 0.0
    %v2105 = vpack.c.bf16 %v2101, %v2101
    %v2106 = vpack.c.bf16 %v2102, %v2102
    %v2107 = vpack.c.bf16 %v2103, %v2103
    %v2108 = vpack.c.bf16 %v2104, %v2104
    %v2109 = vld [vmem:[#allocation6] sm:$0xf]
    %v2110 = vld [vmem:[#allocation6 + $0x4] sm:$0xf]
    %v2111 = vld [vmem:[#allocation6 + $0x8] sm:$0xf]
    %v2112 = vld [vmem:[#allocation6 + $0xc] sm:$0xf]
    %v2113 = vld [vmem:[#allocation6 + $0x10] sm:$0xf]
    %v2114 = vld [vmem:[#allocation6 + $0x14] sm:$0xf]
    %v2115 = vld [vmem:[#allocation6 + $0x18] sm:$0xf]
    %v2116 = vld [vmem:[#allocation6 + $0x1c] sm:$0xf]
    %v2117 = vld [vmem:[#allocation6 + $0x20] sm:$0xf]
    %v2118 = vld [vmem:[#allocation6 + $0x24] sm:$0xf]
    %v2119 = vld [vmem:[#allocation6 + $0x28] sm:$0xf]
    %v2120 = vld [vmem:[#allocation6 + $0x2c] sm:$0xf]
    %v2121 = vld [vmem:[#allocation6 + $0x30] sm:$0xf]
    %v2122 = vld [vmem:[#allocation6 + $0x34] sm:$0xf]
    %v2123 = vld [vmem:[#allocation6 + $0x38] sm:$0xf]
    %v2124 = vld [vmem:[#allocation6 + $0x3c] sm:$0xf]
    %v2125 = vld [vmem:[#allocation6 + $0x40] sm:$0xf]
    %v2126 = vld [vmem:[#allocation6 + $0x44] sm:$0xf]
    %v2127 = vld [vmem:[#allocation6 + $0x48] sm:$0xf]
    %v2128 = vld [vmem:[#allocation6 + $0x4c] sm:$0xf]
    %v2129 = vld [vmem:[#allocation6 + $0x50] sm:$0xf]
    %v2130 = vld [vmem:[#allocation6 + $0x54] sm:$0xf]
    %v2131 = vld [vmem:[#allocation6 + $0x58] sm:$0xf]
    %v2132 = vld [vmem:[#allocation6 + $0x5c] sm:$0xf]
    %v2133 = vld [vmem:[#allocation6 + $0x60] sm:$0xf]
    %v2134 = vld [vmem:[#allocation6 + $0x64] sm:$0xf]
    %v2135 = vld [vmem:[#allocation6 + $0x68] sm:$0xf]
    %v2136 = vld [vmem:[#allocation6 + $0x6c] sm:$0xf]
    %v2137 = vld [vmem:[#allocation6 + $0x70] sm:$0xf]
    %v2138 = vld [vmem:[#allocation6 + $0x74] sm:$0xf]
    %v2139 = vld [vmem:[#allocation6 + $0x78] sm:$0xf]
    %v2140 = vld [vmem:[#allocation6 + $0x7c] sm:$0xf]
    %v2141 = vld [vmem:[#allocation6 + $0x80] sm:$0xf]
    %v2142 = vld [vmem:[#allocation6 + $0x84] sm:$0xf]
    %v2143 = vld [vmem:[#allocation6 + $0x88] sm:$0xf]
    %v2144 = vld [vmem:[#allocation6 + $0x8c] sm:$0xf]
    %v2145 = vld [vmem:[#allocation6 + $0x90] sm:$0xf]
    %v2146 = vld [vmem:[#allocation6 + $0x94] sm:$0xf]
    %v2147 = vld [vmem:[#allocation6 + $0x98] sm:$0xf]
    %v2148 = vld [vmem:[#allocation6 + $0x9c] sm:$0xf]
    %v2149 = vld [vmem:[#allocation6 + $0xa0] sm:$0xf]
    %v2150 = vld [vmem:[#allocation6 + $0xa4] sm:$0xf]
    %v2151 = vld [vmem:[#allocation6 + $0xa8] sm:$0xf]
    %v2152 = vld [vmem:[#allocation6 + $0xac] sm:$0xf]
    %v2153 = vld [vmem:[#allocation6 + $0xb0] sm:$0xf]
    %v2154 = vld [vmem:[#allocation6 + $0xb4] sm:$0xf]
    %v2155 = vld [vmem:[#allocation6 + $0xb8] sm:$0xf]
    %v2156 = vld [vmem:[#allocation6 + $0xbc] sm:$0xf]
    %v2157 = vld [vmem:[#allocation6 + $0xc0] sm:$0xf]
    %v2158 = vld [vmem:[#allocation6 + $0xc4] sm:$0xf]
    %v2159 = vld [vmem:[#allocation6 + $0xc8] sm:$0xf]
    %v2160 = vld [vmem:[#allocation6 + $0xcc] sm:$0xf]
    %v2161 = vld [vmem:[#allocation6 + $0xd0] sm:$0xf]
    %v2162 = vld [vmem:[#allocation6 + $0xd4] sm:$0xf]
    %v2163 = vld [vmem:[#allocation6 + $0xd8] sm:$0xf]
    %v2164 = vld [vmem:[#allocation6 + $0xdc] sm:$0xf]
    %v2165 = vld [vmem:[#allocation6 + $0xe0] sm:$0xf]
    %v2166 = vld [vmem:[#allocation6 + $0xe4] sm:$0xf]
    %v2167 = vld [vmem:[#allocation6 + $0xe8] sm:$0xf]
    %v2168 = vld [vmem:[#allocation6 + $0xec] sm:$0xf]
    %v2169 = vld [vmem:[#allocation6 + $0xf0] sm:$0xf]
    %v2170 = vld [vmem:[#allocation6 + $0xf4] sm:$0xf]
    %v2171 = vld [vmem:[#allocation6 + $0xf8] sm:$0xf]
    %v2172 = vld [vmem:[#allocation6 + $0xfc] sm:$0xf]
    %v2173 = vld [vmem:[%s9] sm:$0x1]
    %v2175 = vlaneseq
    %v2176 = vshrl.u32 %v2175, 7
    %v2177 = vsub.s32 0, %v2176
    %v2178 = vrot.slane %v2173, %v2177
    %v2244 = vunpack.c.l.b16 %v2109
    %v2245 = vunpack.c.l.b16 %v2110
    %v2246 = vunpack.c.l.b16 %v2111
    %v2247 = vunpack.c.l.b16 %v2112
    %v2248 = vunpack.c.l.b16 %v2113
    %v2249 = vunpack.c.l.b16 %v2114
    %v2250 = vunpack.c.l.b16 %v2115
    %v2251 = vunpack.c.l.b16 %v2116
    %v2252 = vunpack.c.l.b16 %v2117
    %v2253 = vunpack.c.l.b16 %v2118
    %v2254 = vunpack.c.l.b16 %v2119
    %v2255 = vunpack.c.l.b16 %v2120
    %v2256 = vunpack.c.l.b16 %v2121
    %v2257 = vunpack.c.l.b16 %v2122
    %v2258 = vunpack.c.l.b16 %v2123
    %v2259 = vunpack.c.l.b16 %v2124
    %v2260 = vunpack.c.l.b16 %v2125
    %v2261 = vunpack.c.l.b16 %v2126
    %v2262 = vunpack.c.l.b16 %v2127
    %v2263 = vunpack.c.l.b16 %v2128
    %v2264 = vunpack.c.l.b16 %v2129
    %v2265 = vunpack.c.l.b16 %v2130
    %v2266 = vunpack.c.l.b16 %v2131
    %v2267 = vunpack.c.l.b16 %v2132
    %v2268 = vunpack.c.l.b16 %v2133
    %v2269 = vunpack.c.l.b16 %v2134
    %v2270 = vunpack.c.l.b16 %v2135
    %v2271 = vunpack.c.l.b16 %v2136
    %v2272 = vunpack.c.l.b16 %v2137
    %v2273 = vunpack.c.l.b16 %v2138
    %v2274 = vunpack.c.l.b16 %v2139
    %v2275 = vunpack.c.l.b16 %v2140
    %v2276 = vunpack.c.l.b16 %v2141
    %v2277 = vunpack.c.l.b16 %v2142
    %v2278 = vunpack.c.l.b16 %v2143
    %v2279 = vunpack.c.l.b16 %v2144
    %v2280 = vunpack.c.l.b16 %v2145
    %v2281 = vunpack.c.l.b16 %v2146
    %v2282 = vunpack.c.l.b16 %v2147
    %v2283 = vunpack.c.l.b16 %v2148
    %v2284 = vunpack.c.l.b16 %v2149
    %v2285 = vunpack.c.l.b16 %v2150
    %v2286 = vunpack.c.l.b16 %v2151
    %v2287 = vunpack.c.l.b16 %v2152
    %v2288 = vunpack.c.l.b16 %v2153
    %v2289 = vunpack.c.l.b16 %v2154
    %v2290 = vunpack.c.l.b16 %v2155
    %v2291 = vunpack.c.l.b16 %v2156
    %v2292 = vunpack.c.l.b16 %v2157
    %v2293 = vunpack.c.l.b16 %v2158
    %v2294 = vunpack.c.l.b16 %v2159
    %v2295 = vunpack.c.l.b16 %v2160
    %v2296 = vunpack.c.l.b16 %v2161
    %v2297 = vunpack.c.l.b16 %v2162
    %v2298 = vunpack.c.l.b16 %v2163
    %v2299 = vunpack.c.l.b16 %v2164
    %v2300 = vunpack.c.l.b16 %v2165
    %v2301 = vunpack.c.l.b16 %v2166
    %v2302 = vunpack.c.l.b16 %v2167
    %v2303 = vunpack.c.l.b16 %v2168
    %v2304 = vunpack.c.l.b16 %v2169
    %v2305 = vunpack.c.l.b16 %v2170
    %v2306 = vunpack.c.l.b16 %v2171
    %v2307 = vunpack.c.l.b16 %v2172
    %v2308 = vpack.c.b16 %v2245, %v2244
    %v2309 = vpack.c.b16 %v2247, %v2246
    %v2310 = vpack.c.b16 %v2249, %v2248
    %v2311 = vpack.c.b16 %v2251, %v2250
    %v2312 = vpack.c.b16 %v2253, %v2252
    %v2313 = vpack.c.b16 %v2255, %v2254
    %v2314 = vpack.c.b16 %v2257, %v2256
    %v2315 = vpack.c.b16 %v2259, %v2258
    %v2316 = vpack.c.b16 %v2261, %v2260
    %v2317 = vpack.c.b16 %v2263, %v2262
    %v2318 = vpack.c.b16 %v2265, %v2264
    %v2319 = vpack.c.b16 %v2267, %v2266
    %v2320 = vpack.c.b16 %v2269, %v2268
    %v2321 = vpack.c.b16 %v2271, %v2270
    %v2322 = vpack.c.b16 %v2273, %v2272
    %v2323 = vpack.c.b16 %v2275, %v2274
    %v2324 = vpack.c.b16 %v2277, %v2276
    %v2325 = vpack.c.b16 %v2279, %v2278
    %v2326 = vpack.c.b16 %v2281, %v2280
    %v2327 = vpack.c.b16 %v2283, %v2282
    %v2328 = vpack.c.b16 %v2285, %v2284
    %v2329 = vpack.c.b16 %v2287, %v2286
    %v2330 = vpack.c.b16 %v2289, %v2288
    %v2331 = vpack.c.b16 %v2291, %v2290
    %v2332 = vpack.c.b16 %v2293, %v2292
    %v2333 = vpack.c.b16 %v2295, %v2294
    %v2334 = vpack.c.b16 %v2297, %v2296
    %v2335 = vpack.c.b16 %v2299, %v2298
    %v2336 = vpack.c.b16 %v2301, %v2300
    %v2337 = vpack.c.b16 %v2303, %v2302
    %v2338 = vpack.c.b16 %v2305, %v2304
    %v2339 = vpack.c.b16 %v2307, %v2306
    %2372 = vmatprep.subr.bf16.mxu0 0
    %2373 = vmatpush1.bf16.msra.mxu0 %v2308
    %2374 = vmatprep.subr.bf16.mxu0 0
    %2375 = vmatpush1.bf16.msra.mxu0 %v2309
    %2376 = vmatprep.subr.bf16.mxu0 0
    %2377 = vmatpush1.bf16.msra.mxu0 %v2310
    %2378 = vmatprep.subr.bf16.mxu0 0
    %2379 = vmatpush1.bf16.msra.mxu0 %v2311
    %2380 = vmatprep.subr.bf16.mxu0 0
    %2381 = vmatpush1.bf16.msra.mxu0 %v2312
    %2382 = vmatprep.subr.bf16.mxu0 0
    %2383 = vmatpush1.bf16.msra.mxu0 %v2313
    %2384 = vmatprep.subr.bf16.mxu0 0
    %2385 = vmatpush1.bf16.msra.mxu0 %v2314
    %2386 = vmatprep.subr.bf16.mxu0 0
    %2387 = vmatpush1.bf16.msra.mxu0 %v2315
    %2388 = vmatprep.subr.bf16.mxu0 0
    %2389 = vmatpush1.bf16.msra.mxu0 %v2316
    %2390 = vmatprep.subr.bf16.mxu0 0
    %2391 = vmatpush1.bf16.msra.mxu0 %v2317
    %2392 = vmatprep.subr.bf16.mxu0 0
    %2393 = vmatpush1.bf16.msra.mxu0 %v2318
    %2394 = vmatprep.subr.bf16.mxu0 0
    %2395 = vmatpush1.bf16.msra.mxu0 %v2319
    %2396 = vmatprep.subr.bf16.mxu0 0
    %2397 = vmatpush1.bf16.msra.mxu0 %v2320
    %2398 = vmatprep.subr.bf16.mxu0 0
    %2399 = vmatpush1.bf16.msra.mxu0 %v2321
    %2400 = vmatprep.subr.bf16.mxu0 0
    %2401 = vmatpush1.bf16.msra.mxu0 %v2322
    %2402 = vmatprep.subr.bf16.mxu0 0
    %2403 = vmatpush1.bf16.msra.mxu0 %v2323
    %2404 = vmatprep.mubr.bf16.mxu0 %v2106
    %2405 = vmatmul.mubr.bf16.gmra.mrb[0].mxu0 %v2105
    %v2406 = vpop.f32.mrb[0].mxu0
    %v2407 = vadd.f32 %v2178, %v2406
    %v2408 = vpop.f32.mrb[0].mxu0
    %v2409 = vpop.f32.mrb[0].mxu0
    %v2410 = vpop.f32.mrb[0].mxu0
    %2411 = vdwg.mxu0
    %2412 = vmatprep.subr.bf16.mxu0 0
    %2413 = vmatpush1.bf16.msra.mxu0 %v2324
    %2414 = vmatprep.subr.bf16.mxu0 0
    %2415 = vmatpush1.bf16.msra.mxu0 %v2325
    %2416 = vmatprep.subr.bf16.mxu0 0
    %2417 = vmatpush1.bf16.msra.mxu0 %v2326
    %2418 = vmatprep.subr.bf16.mxu0 0
    %2419 = vmatpush1.bf16.msra.mxu0 %v2327
    %2420 = vmatprep.subr.bf16.mxu0 0
    %2421 = vmatpush1.bf16.msra.mxu0 %v2328
    %2422 = vmatprep.subr.bf16.mxu0 0
    %2423 = vmatpush1.bf16.msra.mxu0 %v2329
    %2424 = vmatprep.subr.bf16.mxu0 0
    %2425 = vmatpush1.bf16.msra.mxu0 %v2330
    %2426 = vmatprep.subr.bf16.mxu0 0
    %2427 = vmatpush1.bf16.msra.mxu0 %v2331
    %2428 = vmatprep.subr.bf16.mxu0 0
    %2429 = vmatpush1.bf16.msra.mxu0 %v2332
    %2430 = vmatprep.subr.bf16.mxu0 0
    %2431 = vmatpush1.bf16.msra.mxu0 %v2333
    %2432 = vmatprep.subr.bf16.mxu0 0
    %2433 = vmatpush1.bf16.msra.mxu0 %v2334
    %2434 = vmatprep.subr.bf16.mxu0 0
    %2435 = vmatpush1.bf16.msra.mxu0 %v2335
    %2436 = vmatprep.subr.bf16.mxu0 0
    %2437 = vmatpush1.bf16.msra.mxu0 %v2336
    %2438 = vmatprep.subr.bf16.mxu0 0
    %2439 = vmatpush1.bf16.msra.mxu0 %v2337
    %2440 = vmatprep.subr.bf16.mxu0 0
    %2441 = vmatpush1.bf16.msra.mxu0 %v2338
    %2442 = vmatprep.subr.bf16.mxu0 0
    %2443 = vmatpush1.bf16.msra.mxu0 %v2339
    %2444 = vmatprep.mubr.bf16.mxu0 %v2108
    %2445 = vmatmul.mubr.bf16.gmra.mrb[0].mxu0 %v2107
    %v2446 = vpop.f32.mrb[0].mxu0
    %v2447 = vadd.f32 %v2407, %v2446
    %v2448 = vpop.f32.mrb[0].mxu0
    %v2449 = vpop.f32.mrb[0].mxu0
    %v2450 = vpop.f32.mrb[0].mxu0
    %2451 = vdwg.mxu0
    %v2452 = vpack.c.bf16 %v2447, %v2447
    %2453 = vst [vmem:[%s10] sm:$0xf] %v2452
    // Predicated region
    $region54: #{clip_classifier_forward.1} parent=1 // pred_check
      _
    $region55: #{clip_classifier_forward.1} parent=1 // pred_check_branch
      %2455 = sbr.rel (0) target = $region57
    $region56: #{clip_classifier_forward.1} parent=1 // pred_region
      _
    $region57: #{clip_classifier_forward.1} parent=1 // pred_fallthru
      _
    // Predicated region
    $region58: #{clip_classifier_forward.1} parent=1 // pred_check
      _
    $region59: #{clip_classifier_forward.1} parent=1 // pred_check_branch
      %2457 = sbr.rel (0) target = $region61
    $region60: #{clip_classifier_forward.1} parent=1 // pred_region
      _
    $region61: #{clip_classifier_forward.1} parent=1 // pred_fallthru
      _
    %2458 = vsyncpa [#allocation3], 1
    %2459 = vsyncpa [#allocation5], 1

</llo_original>
